<compile_context>
chip_gen: v5e
topology: v5e:2x2
jax: 0.10.0
libtpu: 0.0.40
codegen_flags: <defaults>
</compile_context>

<pallas_src>
import jax
import jax.numpy as jnp
from jax import lax
from jax.experimental import pallas as pl
from jax.experimental.pallas import tpu as pltpu

HIDDEN = 128  # width of the pre-LSTM Linear layers (nn.Linear(..., 128))


def _vmem_spec():
    return pl.BlockSpec(memory_space=pltpu.MemorySpace.VMEM)


def _mm(a, b):
    return jnp.dot(a, b, preferred_element_type=jnp.float32)


def _relu(x):
    return jnp.maximum(x, 0.0)


# ---------------------------------------------------------------------------
# In-kernel helpers
# ---------------------------------------------------------------------------
def _row_replicate(block, reps):
    """Tile a (B, N) block `reps` times along rows -> (reps*B, N); row r = block[r % B].

    Built with a tiny iota selection matrix + matmul (guaranteed Mosaic
    lowering; a sublane-axis jnp.tile/reshape may hit unsupported shape
    casts when B is not a multiple of 8)."""
    b, _ = block.shape
    rows = reps * b
    r = lax.broadcasted_iota(jnp.int32, (rows, b), 0)
    c = lax.broadcasted_iota(jnp.int32, (rows, b), 1)
    sel = jnp.where(r % b == c, 1.0, 0.0).astype(jnp.float32)
    return _mm(sel, block)


def _lstm_tail(gates, wh, T, B, E):
    """LSTM recurrence over precomputed input-side gate activations.

    gates: (T*B, 4E) value, row t*B + b, gate order (i, f, g, o) with
    b_ih + b_hh already folded in.  wh: (E, 4E).  Returns h_T (B, E).
    """
    h = jnp.zeros((B, E), jnp.float32)
    c = jnp.zeros((B, E), jnp.float32)
    # T is static & small: full static unroll.  Gate slices are
    # carry-independent, so they sit off the serial h->h chain; the chain is
    # one fused (B,E)@(E,4E) matmul + sigmoid/tanh + VPU per step.
    # TODO(synk): for long sequences (T >> 16) switch to lax.fori_loop with a
    # bounded unroll and a (T, B, 4E) VMEM scratch to limit live ranges.
    for t in range(T):
        g = gates[t * B:(t + 1) * B, :] + _mm(h, wh)      # (B, 4E)
        i = jax.nn.sigmoid(g[:, :E])
        f = jax.nn.sigmoid(g[:, E:2 * E])
        gbar = jnp.tanh(g[:, 2 * E:3 * E])
        o = jax.nn.sigmoid(g[:, 3 * E:])
        c = f * c + i * gbar
        h = o * jnp.tanh(c)
    return h


def _pred_head(q, echar, emental, w1q, w1e, w1m, b1, w2, b2):
    """Linear(obs+2E, 256) -> ReLU -> Linear(256, A) -> Softmax, concat-free."""
    zp = _mm(q, w1q) + _mm(echar, w1e) + b1
    if emental is not None:
        zp = zp + _mm(emental, w1m)
    zp = _relu(zp)
    logits = _mm(zp, w2) + b2
    m = jnp.max(logits, axis=-1, keepdims=True)
    e = jnp.exp(logits - m)
    return e * pl.reciprocal(jnp.sum(e, axis=-1, keepdims=True))  # exact


# ---------------------------------------------------------------------------
# Fused kernel: character encoder -> mental encoder -> prediction head
# ---------------------------------------------------------------------------
def _tomnet_full_kernel(past_ref, cur_ref, q_ref,
                        cw1_ref, cb1_ref, cwi_ref, cwh_ref, cbg_ref,
                        mw1x_ref, mw1e_ref, mb1_ref, mwi_ref, mwh_ref, mbg_ref,
                        pw1q_ref, pw1e_ref, pw1m_ref, pb1_ref, pw2_ref, pb2_ref,
                        out_ref):
    B = q_ref.shape[0]
    E = cwh_ref.shape[0]
    Tp = past_ref.shape[0] // B
    Tc = cur_ref.shape[0] // B

    # --- character encoder: Linear+ReLU hoisted over all Tp*B rows, one
    #     fused (128,4E) gate projection, then the serial recurrence. ---
    zc = _relu(_mm(past_ref[...], cw1_ref[...]) + cb1_ref[...])
    gc = _mm(zc, cwi_ref[...]) + cbg_ref[...]
    echar = _lstm_tail(gc, cwh_ref[...], Tp, B, E)

    # --- mental encoder: the echar branch of the reference concat enters
    #     through its own weight slice, computed ONCE then row-replicated. ---
    e_term = _mm(echar, mw1e_ref[...])                     # (B, 128)
    zm = _relu(_mm(cur_ref[...], mw1x_ref[...])
               + _row_replicate(e_term, Tc) + mb1_ref[...])
    gm = _mm(zm, mwi_ref[...]) + mbg_ref[...]
    emental = _lstm_tail(gm, mwh_ref[...], Tc, B, E)

    # --- prediction head + softmax ---
    out_ref[...] = _pred_head(q_ref[...], echar, emental,
                              pw1q_ref[...], pw1e_ref[...], pw1m_ref[...],
                              pb1_ref[...], pw2_ref[...], pb2_ref[...])


# ---------------------------------------------------------------------------
# Fused kernel for the empty-current-trajectory branch (emental = 0).
# ---------------------------------------------------------------------------
def _tomnet_nocur_kernel(past_ref, q_ref,
                         cw1_ref, cb1_ref, cwi_ref, cwh_ref, cbg_ref,
                         pw1q_ref, pw1e_ref, pb1_ref, pw2_ref, pb2_ref,
                         out_ref):
    B = q_ref.shape[0]
    E = cwh_ref.shape[0]
    Tp = past_ref.shape[0] // B
    zc = _relu(_mm(past_ref[...], cw1_ref[...]) + cb1_ref[...])
    gc = _mm(zc, cwi_ref[...]) + cbg_ref[...]
    echar = _lstm_tail(gc, cwh_ref[...], Tp, B, E)
    # emental = 0 -> its head contribution vanishes; skip the matmul entirely.
    out_ref[...] = _pred_head(q_ref[...], echar, None,
                              pw1q_ref[...], pw1e_ref[...], None,
                              pb1_ref[...], pw2_ref[...], pb2_ref[...])


# ---------------------------------------------------------------------------
# Wrapper
# ---------------------------------------------------------------------------
def tomnet_forward(params, past_traj, current_traj, query_obs,
                   embed_dim, action_dim):
    B, Tp, Dc = past_traj.shape
    Tc = current_traj.shape[1]
    obs_dim = query_obs.shape[1]
    E = embed_dim

    # Batch-first -> time-major flattened rows (row t*B + b), pure XLA.
    past = jnp.transpose(past_traj.astype(jnp.float32),
                         (1, 0, 2)).reshape(Tp * B, Dc)
    q = query_obs.astype(jnp.float32)
    pc, pm, pp = params["char"], params["mental"], params["pred"]

    # TODO(synk): for large batch on v7x add a leading "parallel" grid axis
    # over batch tiles so both TensorCores are used (pointless at B=2).
    compiler_params = pltpu.CompilerParams(vmem_limit_bytes=32 * 1024 * 1024)
    out_shape = jax.ShapeDtypeStruct((B, action_dim), jnp.float32)

    if Tc > 0:
        cur = jnp.transpose(current_traj.astype(jnp.float32),
                            (1, 0, 2)).reshape(Tc * B, Dc)
        args = (past, cur, q,
                pc["w1"], pc["b1"], pc["wi"], pc["wh"], pc["bg"],
                pm["w1x"], pm["w1e"], pm["b1"], pm["wi"], pm["wh"], pm["bg"],
                pp["w1q"], pp["w1e"], pp["w1m"], pp["b1"], pp["w2"], pp["b2"])
        flops = (2 * Tp * B * (Dc * HIDDEN + HIDDEN * 4 * E + E * 4 * E)
                 + 2 * Tc * B * (Dc * HIDDEN + HIDDEN * 4 * E + E * 4 * E)
                 + 2 * B * E * HIDDEN + 2 * Tc * B * B * HIDDEN
                 + 2 * B * ((obs_dim + 2 * E) * 256 + 256 * action_dim))
        transcendentals = 5 * E * B * (Tp + Tc) + B * action_dim
        bytes_accessed = 4 * (sum(int(a.size) for a in args)
                              + (Tp + Tc) * B * (HIDDEN + 4 * E)   # z + gates
                              + B * action_dim)
        return pl.pallas_call(
            _tomnet_full_kernel,
            out_shape=out_shape,
            in_specs=[_vmem_spec()] * len(args),
            out_specs=_vmem_spec(),
            compiler_params=compiler_params,
            cost_estimate=pl.CostEstimate(flops=flops,
                                          transcendentals=transcendentals,
                                          bytes_accessed=bytes_accessed),
        )(*args)

    # Empty current trajectory: emental = 0, char encoder + head only.
    args = (past, q,
            pc["w1"], pc["b1"], pc["wi"], pc["wh"], pc["bg"],
            pp["w1q"], pp["w1e"], pp["b1"], pp["w2"], pp["b2"])
    return pl.pallas_call(
        _tomnet_nocur_kernel,
        out_shape=out_shape,
        in_specs=[_vmem_spec()] * len(args),
        out_specs=_vmem_spec(),
        compiler_params=compiler_params,
    )(*args)


# ---------------------------------------------------------------------------
# Deterministic parameter construction (shapes follow the PyTorch __init__).
# Weights stored (in, out) so kernels compute x @ W + b.  LSTM gate weights
# are fused lane-dense: wi (128, 4E), wh (E, 4E), bg (1, 4E) in PyTorch gate
# order (i, f, g, o); bg is the folded per-gate bias (b_ih + b_hh).
# ---------------------------------------------------------------------------
def _uniform(key, shape, scale):
    return jax.random.uniform(key, shape, jnp.float32, -scale, scale)


def _init_seq_params(key, x_dim, embed_dim, echar_dim=0):
    ks = jax.random.split(key, 6)
    s_lin = (x_dim + echar_dim) ** -0.5
    s_lstm = embed_dim ** -0.5
    p = {
        "b1": _uniform(ks[2], (1, HIDDEN), s_lin),
        "wi": _uniform(ks[3], (HIDDEN, 4 * embed_dim), s_lstm),
        "wh": _uniform(ks[4], (embed_dim, 4 * embed_dim), s_lstm),
        "bg": _uniform(ks[5], (1, 4 * embed_dim), s_lstm),
    }
    if echar_dim:
        p["w1x"] = _uniform(ks[0], (x_dim, HIDDEN), s_lin)
        p["w1e"] = _uniform(ks[1], (echar_dim, HIDDEN), s_lin)
    else:
        p["w1"] = _uniform(ks[0], (x_dim, HIDDEN), s_lin)
    return p


def init_tomnet_params(key, obs_dim, action_dim, embed_dim):
    k_char, k_mental, kp = jax.random.split(key, 3)
    kps = jax.random.split(kp, 6)
    pred_in = obs_dim + 2 * embed_dim
    s1 = pred_in ** -0.5
    s2 = 256.0 ** -0.5
    return {
        "char": _init_seq_params(k_char, obs_dim + 1, embed_dim),
        "mental": _init_seq_params(k_mental, obs_dim + 1, embed_dim,
                                   echar_dim=embed_dim),
        "pred": {
            "w1q": _uniform(kps[0], (obs_dim, 256), s1),
            "w1e": _uniform(kps[1], (embed_dim, 256), s1),
            "w1m": _uniform(kps[2], (embed_dim, 256), s1),
            "b1": _uniform(kps[3], (1, 256), s1),
            "w2": _uniform(kps[4], (256, action_dim), s2),
            "b2": _uniform(kps[5], (1, action_dim), s2),
        },
    }


if __name__ == "__main__":
    obs_dim, action_dim, embed_dim = 8, 5, 16
    B, T_past, T_cur = 2, 8, 6

    key = jax.random.PRNGKey(0)
    k_params, k_past, k_cur, k_q = jax.random.split(key, 4)

    params = init_tomnet_params(k_params, obs_dim, action_dim, embed_dim)
    past_traj = jax.random.normal(k_past, (B, T_past, obs_dim + 1), jnp.float32)
    current_traj = jax.random.normal(k_cur, (B, T_cur, obs_dim + 1), jnp.float32)
    query_obs = jax.random.normal(k_q, (B, obs_dim), jnp.float32)

    out = tomnet_forward(params, past_traj, current_traj, query_obs,
                         embed_dim, action_dim)
    out = jax.block_until_ready(out)

    assert out.shape == (B, action_dim)
    # softmax rows should sum to ~1 (exact reciprocal used, not approx)
    assert bool(jnp.all(jnp.abs(jnp.sum(out, axis=-1) - 1.0) < 1e-4))
    print("KERNEL_OK")
</pallas_src>

<mosaic_0001>
module attributes {stable_mosaic.version = 11 : i64} {
  func.func @_tomnet_full_kernel(%arg0: memref<16x9xf32, #tpu.memory_space<vmem>>, %arg1: memref<12x9xf32, #tpu.memory_space<vmem>>, %arg2: memref<2x8xf32, #tpu.memory_space<vmem>>, %arg3: memref<9x128xf32, #tpu.memory_space<vmem>>, %arg4: memref<1x128xf32, #tpu.memory_space<vmem>>, %arg5: memref<128x64xf32, #tpu.memory_space<vmem>>, %arg6: memref<16x64xf32, #tpu.memory_space<vmem>>, %arg7: memref<1x64xf32, #tpu.memory_space<vmem>>, %arg8: memref<9x128xf32, #tpu.memory_space<vmem>>, %arg9: memref<16x128xf32, #tpu.memory_space<vmem>>, %arg10: memref<1x128xf32, #tpu.memory_space<vmem>>, %arg11: memref<128x64xf32, #tpu.memory_space<vmem>>, %arg12: memref<16x64xf32, #tpu.memory_space<vmem>>, %arg13: memref<1x64xf32, #tpu.memory_space<vmem>>, %arg14: memref<8x256xf32, #tpu.memory_space<vmem>>, %arg15: memref<16x256xf32, #tpu.memory_space<vmem>>, %arg16: memref<16x256xf32, #tpu.memory_space<vmem>>, %arg17: memref<1x256xf32, #tpu.memory_space<vmem>>, %arg18: memref<256x5xf32, #tpu.memory_space<vmem>>, %arg19: memref<1x5xf32, #tpu.memory_space<vmem>>, %arg20: memref<2x5xf32, #tpu.memory_space<vmem>>) attributes {dimension_semantics = [], scalar_prefetch = 0 : i64, scratch_operands = 0 : i64, tpu.core_type = #tpu.core_type<tc>} {
    %c0 = arith.constant 0 : index
    %c0_0 = arith.constant 0 : index
    %0 = vector.load %arg0[%c0, %c0_0] : memref<16x9xf32, #tpu.memory_space<vmem>>, vector<16x9xf32>
    %c0_1 = arith.constant 0 : index
    %c0_2 = arith.constant 0 : index
    %1 = vector.load %arg3[%c0_1, %c0_2] : memref<9x128xf32, #tpu.memory_space<vmem>>, vector<9x128xf32>
    %cst = arith.constant dense<0.000000e+00> : vector<16x128xf32>
    %2 = tpu.matmul %0, %1, %cst {dimension_numbers = #tpu.dot_dimension_numbers<[1], [0], [0], [1], [0, 0, 1, 1], [], []>} : vector<16x9xf32>, vector<9x128xf32>, vector<16x128xf32> -> vector<16x128xf32>
    %c0_3 = arith.constant 0 : index
    %c0_4 = arith.constant 0 : index
    %3 = vector.load %arg4[%c0_3, %c0_4] : memref<1x128xf32, #tpu.memory_space<vmem>>, vector<1x128xf32>
    %4 = vector.broadcast %3 : vector<1x128xf32> to vector<16x128xf32>
    %5 = arith.addf %2, %4 : vector<16x128xf32>
    %cst_5 = arith.constant 0.000000e+00 : f32
    %6 = vector.broadcast %cst_5 : f32 to vector<16x128xf32>
    %7 = arith.maximumf %5, %6 : vector<16x128xf32>
    %c0_6 = arith.constant 0 : index
    %c0_7 = arith.constant 0 : index
    %8 = vector.load %arg5[%c0_6, %c0_7] : memref<128x64xf32, #tpu.memory_space<vmem>>, vector<128x64xf32>
    %cst_8 = arith.constant dense<0.000000e+00> : vector<16x64xf32>
    %9 = tpu.matmul %7, %8, %cst_8 {dimension_numbers = #tpu.dot_dimension_numbers<[1], [0], [0], [1], [0, 0, 1, 1], [], []>} : vector<16x128xf32>, vector<128x64xf32>, vector<16x64xf32> -> vector<16x64xf32>
    %c0_9 = arith.constant 0 : index
    %c0_10 = arith.constant 0 : index
    %10 = vector.load %arg7[%c0_9, %c0_10] : memref<1x64xf32, #tpu.memory_space<vmem>>, vector<1x64xf32>
    %11 = vector.broadcast %10 : vector<1x64xf32> to vector<16x64xf32>
    %12 = arith.addf %9, %11 : vector<16x64xf32>
    %c0_11 = arith.constant 0 : index
    %c0_12 = arith.constant 0 : index
    %13 = vector.load %arg6[%c0_11, %c0_12] : memref<16x64xf32, #tpu.memory_space<vmem>>, vector<16x64xf32>
    %cst_13 = arith.constant 0.000000e+00 : f32
    %14 = vector.broadcast %cst_13 : f32 to vector<2x16xf32>
    %cst_14 = arith.constant 0.000000e+00 : f32
    %15 = vector.broadcast %cst_14 : f32 to vector<2x16xf32>
    %16 = vector.extract_strided_slice %12 {offsets = [0, 0], sizes = [2, 64], strides = [1, 1]} : vector<16x64xf32> to vector<2x64xf32>
    %cst_15 = arith.constant dense<0.000000e+00> : vector<2x64xf32>
    %17 = tpu.matmul %14, %13, %cst_15 {dimension_numbers = #tpu.dot_dimension_numbers<[1], [0], [0], [1], [0, 0, 1, 1], [], []>} : vector<2x16xf32>, vector<16x64xf32>, vector<2x64xf32> -> vector<2x64xf32>
    %18 = arith.addf %16, %17 : vector<2x64xf32>
    %19 = vector.extract_strided_slice %18 {offsets = [0, 0], sizes = [2, 16], strides = [1, 1]} : vector<2x64xf32> to vector<2x16xf32>
    %20 = arith.negf %19 : vector<2x16xf32>
    %21 = math.exp %20 : vector<2x16xf32>
    %cst_16 = arith.constant 1.000000e+00 : f32
    %22 = vector.broadcast %cst_16 : f32 to vector<2x16xf32>
    %23 = arith.addf %22, %21 : vector<2x16xf32>
    %24 = arith.divf %22, %23 : vector<2x16xf32>
    %25 = vector.extract_strided_slice %18 {offsets = [0, 16], sizes = [2, 16], strides = [1, 1]} : vector<2x64xf32> to vector<2x16xf32>
    %26 = arith.negf %25 : vector<2x16xf32>
    %27 = math.exp %26 : vector<2x16xf32>
    %cst_17 = arith.constant 1.000000e+00 : f32
    %28 = vector.broadcast %cst_17 : f32 to vector<2x16xf32>
    %29 = arith.addf %28, %27 : vector<2x16xf32>
    %30 = arith.divf %28, %29 : vector<2x16xf32>
    %31 = vector.extract_strided_slice %18 {offsets = [0, 32], sizes = [2, 16], strides = [1, 1]} : vector<2x64xf32> to vector<2x16xf32>
    %32 = math.tanh %31 : vector<2x16xf32>
    %33 = vector.extract_strided_slice %18 {offsets = [0, 48], sizes = [2, 16], strides = [1, 1]} : vector<2x64xf32> to vector<2x16xf32>
    %34 = arith.negf %33 : vector<2x16xf32>
    %35 = math.exp %34 : vector<2x16xf32>
    %cst_18 = arith.constant 1.000000e+00 : f32
    %36 = vector.broadcast %cst_18 : f32 to vector<2x16xf32>
    %37 = arith.addf %36, %35 : vector<2x16xf32>
    %38 = arith.divf %36, %37 : vector<2x16xf32>
    %39 = arith.mulf %30, %15 : vector<2x16xf32>
    %40 = arith.mulf %24, %32 : vector<2x16xf32>
    %41 = arith.addf %39, %40 : vector<2x16xf32>
    %42 = math.tanh %41 : vector<2x16xf32>
    %43 = arith.mulf %38, %42 : vector<2x16xf32>
    %44 = vector.extract_strided_slice %12 {offsets = [2, 0], sizes = [2, 64], strides = [1, 1]} : vector<16x64xf32> to vector<2x64xf32>
    %cst_19 = arith.constant dense<0.000000e+00> : vector<2x64xf32>
    %45 = tpu.matmul %43, %13, %cst_19 {dimension_numbers = #tpu.dot_dimension_numbers<[1], [0], [0], [1], [0, 0, 1, 1], [], []>} : vector<2x16xf32>, vector<16x64xf32>, vector<2x64xf32> -> vector<2x64xf32>
    %46 = arith.addf %44, %45 : vector<2x64xf32>
    %47 = vector.extract_strided_slice %46 {offsets = [0, 0], sizes = [2, 16], strides = [1, 1]} : vector<2x64xf32> to vector<2x16xf32>
    %48 = arith.negf %47 : vector<2x16xf32>
    %49 = math.exp %48 : vector<2x16xf32>
    %cst_20 = arith.constant 1.000000e+00 : f32
    %50 = vector.broadcast %cst_20 : f32 to vector<2x16xf32>
    %51 = arith.addf %50, %49 : vector<2x16xf32>
    %52 = arith.divf %50, %51 : vector<2x16xf32>
    %53 = vector.extract_strided_slice %46 {offsets = [0, 16], sizes = [2, 16], strides = [1, 1]} : vector<2x64xf32> to vector<2x16xf32>
    %54 = arith.negf %53 : vector<2x16xf32>
    %55 = math.exp %54 : vector<2x16xf32>
    %cst_21 = arith.constant 1.000000e+00 : f32
    %56 = vector.broadcast %cst_21 : f32 to vector<2x16xf32>
    %57 = arith.addf %56, %55 : vector<2x16xf32>
    %58 = arith.divf %56, %57 : vector<2x16xf32>
    %59 = vector.extract_strided_slice %46 {offsets = [0, 32], sizes = [2, 16], strides = [1, 1]} : vector<2x64xf32> to vector<2x16xf32>
    %60 = math.tanh %59 : vector<2x16xf32>
    %61 = vector.extract_strided_slice %46 {offsets = [0, 48], sizes = [2, 16], strides = [1, 1]} : vector<2x64xf32> to vector<2x16xf32>
    %62 = arith.negf %61 : vector<2x16xf32>
    %63 = math.exp %62 : vector<2x16xf32>
    %cst_22 = arith.constant 1.000000e+00 : f32
    %64 = vector.broadcast %cst_22 : f32 to vector<2x16xf32>
    %65 = arith.addf %64, %63 : vector<2x16xf32>
    %66 = arith.divf %64, %65 : vector<2x16xf32>
    %67 = arith.mulf %58, %41 : vector<2x16xf32>
    %68 = arith.mulf %52, %60 : vector<2x16xf32>
    %69 = arith.addf %67, %68 : vector<2x16xf32>
    %70 = math.tanh %69 : vector<2x16xf32>
    %71 = arith.mulf %66, %70 : vector<2x16xf32>
    %72 = vector.extract_strided_slice %12 {offsets = [4, 0], sizes = [2, 64], strides = [1, 1]} : vector<16x64xf32> to vector<2x64xf32>
    %cst_23 = arith.constant dense<0.000000e+00> : vector<2x64xf32>
    %73 = tpu.matmul %71, %13, %cst_23 {dimension_numbers = #tpu.dot_dimension_numbers<[1], [0], [0], [1], [0, 0, 1, 1], [], []>} : vector<2x16xf32>, vector<16x64xf32>, vector<2x64xf32> -> vector<2x64xf32>
    %74 = arith.addf %72, %73 : vector<2x64xf32>
    %75 = vector.extract_strided_slice %74 {offsets = [0, 0], sizes = [2, 16], strides = [1, 1]} : vector<2x64xf32> to vector<2x16xf32>
    %76 = arith.negf %75 : vector<2x16xf32>
    %77 = math.exp %76 : vector<2x16xf32>
    %cst_24 = arith.constant 1.000000e+00 : f32
    %78 = vector.broadcast %cst_24 : f32 to vector<2x16xf32>
    %79 = arith.addf %78, %77 : vector<2x16xf32>
    %80 = arith.divf %78, %79 : vector<2x16xf32>
    %81 = vector.extract_strided_slice %74 {offsets = [0, 16], sizes = [2, 16], strides = [1, 1]} : vector<2x64xf32> to vector<2x16xf32>
    %82 = arith.negf %81 : vector<2x16xf32>
    %83 = math.exp %82 : vector<2x16xf32>
    %cst_25 = arith.constant 1.000000e+00 : f32
    %84 = vector.broadcast %cst_25 : f32 to vector<2x16xf32>
    %85 = arith.addf %84, %83 : vector<2x16xf32>
    %86 = arith.divf %84, %85 : vector<2x16xf32>
    %87 = vector.extract_strided_slice %74 {offsets = [0, 32], sizes = [2, 16], strides = [1, 1]} : vector<2x64xf32> to vector<2x16xf32>
    %88 = math.tanh %87 : vector<2x16xf32>
    %89 = vector.extract_strided_slice %74 {offsets = [0, 48], sizes = [2, 16], strides = [1, 1]} : vector<2x64xf32> to vector<2x16xf32>
    %90 = arith.negf %89 : vector<2x16xf32>
    %91 = math.exp %90 : vector<2x16xf32>
    %cst_26 = arith.constant 1.000000e+00 : f32
    %92 = vector.broadcast %cst_26 : f32 to vector<2x16xf32>
    %93 = arith.addf %92, %91 : vector<2x16xf32>
    %94 = arith.divf %92, %93 : vector<2x16xf32>
    %95 = arith.mulf %86, %69 : vector<2x16xf32>
    %96 = arith.mulf %80, %88 : vector<2x16xf32>
    %97 = arith.addf %95, %96 : vector<2x16xf32>
    %98 = math.tanh %97 : vector<2x16xf32>
    %99 = arith.mulf %94, %98 : vector<2x16xf32>
    %100 = vector.extract_strided_slice %12 {offsets = [6, 0], sizes = [2, 64], strides = [1, 1]} : vector<16x64xf32> to vector<2x64xf32>
    %cst_27 = arith.constant dense<0.000000e+00> : vector<2x64xf32>
    %101 = tpu.matmul %99, %13, %cst_27 {dimension_numbers = #tpu.dot_dimension_numbers<[1], [0], [0], [1], [0, 0, 1, 1], [], []>} : vector<2x16xf32>, vector<16x64xf32>, vector<2x64xf32> -> vector<2x64xf32>
    %102 = arith.addf %100, %101 : vector<2x64xf32>
    %103 = vector.extract_strided_slice %102 {offsets = [0, 0], sizes = [2, 16], strides = [1, 1]} : vector<2x64xf32> to vector<2x16xf32>
    %104 = arith.negf %103 : vector<2x16xf32>
    %105 = math.exp %104 : vector<2x16xf32>
    %cst_28 = arith.constant 1.000000e+00 : f32
    %106 = vector.broadcast %cst_28 : f32 to vector<2x16xf32>
    %107 = arith.addf %106, %105 : vector<2x16xf32>
    %108 = arith.divf %106, %107 : vector<2x16xf32>
    %109 = vector.extract_strided_slice %102 {offsets = [0, 16], sizes = [2, 16], strides = [1, 1]} : vector<2x64xf32> to vector<2x16xf32>
    %110 = arith.negf %109 : vector<2x16xf32>
    %111 = math.exp %110 : vector<2x16xf32>
    %cst_29 = arith.constant 1.000000e+00 : f32
    %112 = vector.broadcast %cst_29 : f32 to vector<2x16xf32>
    %113 = arith.addf %112, %111 : vector<2x16xf32>
    %114 = arith.divf %112, %113 : vector<2x16xf32>
    %115 = vector.extract_strided_slice %102 {offsets = [0, 32], sizes = [2, 16], strides = [1, 1]} : vector<2x64xf32> to vector<2x16xf32>
    %116 = math.tanh %115 : vector<2x16xf32>
    %117 = vector.extract_strided_slice %102 {offsets = [0, 48], sizes = [2, 16], strides = [1, 1]} : vector<2x64xf32> to vector<2x16xf32>
    %118 = arith.negf %117 : vector<2x16xf32>
    %119 = math.exp %118 : vector<2x16xf32>
    %cst_30 = arith.constant 1.000000e+00 : f32
    %120 = vector.broadcast %cst_30 : f32 to vector<2x16xf32>
    %121 = arith.addf %120, %119 : vector<2x16xf32>
    %122 = arith.divf %120, %121 : vector<2x16xf32>
    %123 = arith.mulf %114, %97 : vector<2x16xf32>
    %124 = arith.mulf %108, %116 : vector<2x16xf32>
    %125 = arith.addf %123, %124 : vector<2x16xf32>
    %126 = math.tanh %125 : vector<2x16xf32>
    %127 = arith.mulf %122, %126 : vector<2x16xf32>
    %128 = vector.extract_strided_slice %12 {offsets = [8, 0], sizes = [2, 64], strides = [1, 1]} : vector<16x64xf32> to vector<2x64xf32>
    %cst_31 = arith.constant dense<0.000000e+00> : vector<2x64xf32>
    %129 = tpu.matmul %127, %13, %cst_31 {dimension_numbers = #tpu.dot_dimension_numbers<[1], [0], [0], [1], [0, 0, 1, 1], [], []>} : vector<2x16xf32>, vector<16x64xf32>, vector<2x64xf32> -> vector<2x64xf32>
    %130 = arith.addf %128, %129 : vector<2x64xf32>
    %131 = vector.extract_strided_slice %130 {offsets = [0, 0], sizes = [2, 16], strides = [1, 1]} : vector<2x64xf32> to vector<2x16xf32>
    %132 = arith.negf %131 : vector<2x16xf32>
    %133 = math.exp %132 : vector<2x16xf32>
    %cst_32 = arith.constant 1.000000e+00 : f32
    %134 = vector.broadcast %cst_32 : f32 to vector<2x16xf32>
    %135 = arith.addf %134, %133 : vector<2x16xf32>
    %136 = arith.divf %134, %135 : vector<2x16xf32>
    %137 = vector.extract_strided_slice %130 {offsets = [0, 16], sizes = [2, 16], strides = [1, 1]} : vector<2x64xf32> to vector<2x16xf32>
    %138 = arith.negf %137 : vector<2x16xf32>
    %139 = math.exp %138 : vector<2x16xf32>
    %cst_33 = arith.constant 1.000000e+00 : f32
    %140 = vector.broadcast %cst_33 : f32 to vector<2x16xf32>
    %141 = arith.addf %140, %139 : vector<2x16xf32>
    %142 = arith.divf %140, %141 : vector<2x16xf32>
    %143 = vector.extract_strided_slice %130 {offsets = [0, 32], sizes = [2, 16], strides = [1, 1]} : vector<2x64xf32> to vector<2x16xf32>
    %144 = math.tanh %143 : vector<2x16xf32>
    %145 = vector.extract_strided_slice %130 {offsets = [0, 48], sizes = [2, 16], strides = [1, 1]} : vector<2x64xf32> to vector<2x16xf32>
    %146 = arith.negf %145 : vector<2x16xf32>
    %147 = math.exp %146 : vector<2x16xf32>
    %cst_34 = arith.constant 1.000000e+00 : f32
    %148 = vector.broadcast %cst_34 : f32 to vector<2x16xf32>
    %149 = arith.addf %148, %147 : vector<2x16xf32>
    %150 = arith.divf %148, %149 : vector<2x16xf32>
    %151 = arith.mulf %142, %125 : vector<2x16xf32>
    %152 = arith.mulf %136, %144 : vector<2x16xf32>
    %153 = arith.addf %151, %152 : vector<2x16xf32>
    %154 = math.tanh %153 : vector<2x16xf32>
    %155 = arith.mulf %150, %154 : vector<2x16xf32>
    %156 = vector.extract_strided_slice %12 {offsets = [10, 0], sizes = [2, 64], strides = [1, 1]} : vector<16x64xf32> to vector<2x64xf32>
    %cst_35 = arith.constant dense<0.000000e+00> : vector<2x64xf32>
    %157 = tpu.matmul %155, %13, %cst_35 {dimension_numbers = #tpu.dot_dimension_numbers<[1], [0], [0], [1], [0, 0, 1, 1], [], []>} : vector<2x16xf32>, vector<16x64xf32>, vector<2x64xf32> -> vector<2x64xf32>
    %158 = arith.addf %156, %157 : vector<2x64xf32>
    %159 = vector.extract_strided_slice %158 {offsets = [0, 0], sizes = [2, 16], strides = [1, 1]} : vector<2x64xf32> to vector<2x16xf32>
    %160 = arith.negf %159 : vector<2x16xf32>
    %161 = math.exp %160 : vector<2x16xf32>
    %cst_36 = arith.constant 1.000000e+00 : f32
    %162 = vector.broadcast %cst_36 : f32 to vector<2x16xf32>
    %163 = arith.addf %162, %161 : vector<2x16xf32>
    %164 = arith.divf %162, %163 : vector<2x16xf32>
    %165 = vector.extract_strided_slice %158 {offsets = [0, 16], sizes = [2, 16], strides = [1, 1]} : vector<2x64xf32> to vector<2x16xf32>
    %166 = arith.negf %165 : vector<2x16xf32>
    %167 = math.exp %166 : vector<2x16xf32>
    %cst_37 = arith.constant 1.000000e+00 : f32
    %168 = vector.broadcast %cst_37 : f32 to vector<2x16xf32>
    %169 = arith.addf %168, %167 : vector<2x16xf32>
    %170 = arith.divf %168, %169 : vector<2x16xf32>
    %171 = vector.extract_strided_slice %158 {offsets = [0, 32], sizes = [2, 16], strides = [1, 1]} : vector<2x64xf32> to vector<2x16xf32>
    %172 = math.tanh %171 : vector<2x16xf32>
    %173 = vector.extract_strided_slice %158 {offsets = [0, 48], sizes = [2, 16], strides = [1, 1]} : vector<2x64xf32> to vector<2x16xf32>
    %174 = arith.negf %173 : vector<2x16xf32>
    %175 = math.exp %174 : vector<2x16xf32>
    %cst_38 = arith.constant 1.000000e+00 : f32
    %176 = vector.broadcast %cst_38 : f32 to vector<2x16xf32>
    %177 = arith.addf %176, %175 : vector<2x16xf32>
    %178 = arith.divf %176, %177 : vector<2x16xf32>
    %179 = arith.mulf %170, %153 : vector<2x16xf32>
    %180 = arith.mulf %164, %172 : vector<2x16xf32>
    %181 = arith.addf %179, %180 : vector<2x16xf32>
    %182 = math.tanh %181 : vector<2x16xf32>
    %183 = arith.mulf %178, %182 : vector<2x16xf32>
    %184 = vector.extract_strided_slice %12 {offsets = [12, 0], sizes = [2, 64], strides = [1, 1]} : vector<16x64xf32> to vector<2x64xf32>
    %cst_39 = arith.constant dense<0.000000e+00> : vector<2x64xf32>
    %185 = tpu.matmul %183, %13, %cst_39 {dimension_numbers = #tpu.dot_dimension_numbers<[1], [0], [0], [1], [0, 0, 1, 1], [], []>} : vector<2x16xf32>, vector<16x64xf32>, vector<2x64xf32> -> vector<2x64xf32>
    %186 = arith.addf %184, %185 : vector<2x64xf32>
    %187 = vector.extract_strided_slice %186 {offsets = [0, 0], sizes = [2, 16], strides = [1, 1]} : vector<2x64xf32> to vector<2x16xf32>
    %188 = arith.negf %187 : vector<2x16xf32>
    %189 = math.exp %188 : vector<2x16xf32>
    %cst_40 = arith.constant 1.000000e+00 : f32
    %190 = vector.broadcast %cst_40 : f32 to vector<2x16xf32>
    %191 = arith.addf %190, %189 : vector<2x16xf32>
    %192 = arith.divf %190, %191 : vector<2x16xf32>
    %193 = vector.extract_strided_slice %186 {offsets = [0, 16], sizes = [2, 16], strides = [1, 1]} : vector<2x64xf32> to vector<2x16xf32>
    %194 = arith.negf %193 : vector<2x16xf32>
    %195 = math.exp %194 : vector<2x16xf32>
    %cst_41 = arith.constant 1.000000e+00 : f32
    %196 = vector.broadcast %cst_41 : f32 to vector<2x16xf32>
    %197 = arith.addf %196, %195 : vector<2x16xf32>
    %198 = arith.divf %196, %197 : vector<2x16xf32>
    %199 = vector.extract_strided_slice %186 {offsets = [0, 32], sizes = [2, 16], strides = [1, 1]} : vector<2x64xf32> to vector<2x16xf32>
    %200 = math.tanh %199 : vector<2x16xf32>
    %201 = vector.extract_strided_slice %186 {offsets = [0, 48], sizes = [2, 16], strides = [1, 1]} : vector<2x64xf32> to vector<2x16xf32>
    %202 = arith.negf %201 : vector<2x16xf32>
    %203 = math.exp %202 : vector<2x16xf32>
    %cst_42 = arith.constant 1.000000e+00 : f32
    %204 = vector.broadcast %cst_42 : f32 to vector<2x16xf32>
    %205 = arith.addf %204, %203 : vector<2x16xf32>
    %206 = arith.divf %204, %205 : vector<2x16xf32>
    %207 = arith.mulf %198, %181 : vector<2x16xf32>
    %208 = arith.mulf %192, %200 : vector<2x16xf32>
    %209 = arith.addf %207, %208 : vector<2x16xf32>
    %210 = math.tanh %209 : vector<2x16xf32>
    %211 = arith.mulf %206, %210 : vector<2x16xf32>
    %212 = vector.extract_strided_slice %12 {offsets = [14, 0], sizes = [2, 64], strides = [1, 1]} : vector<16x64xf32> to vector<2x64xf32>
    %cst_43 = arith.constant dense<0.000000e+00> : vector<2x64xf32>
    %213 = tpu.matmul %211, %13, %cst_43 {dimension_numbers = #tpu.dot_dimension_numbers<[1], [0], [0], [1], [0, 0, 1, 1], [], []>} : vector<2x16xf32>, vector<16x64xf32>, vector<2x64xf32> -> vector<2x64xf32>
    %214 = arith.addf %212, %213 : vector<2x64xf32>
    %215 = vector.extract_strided_slice %214 {offsets = [0, 0], sizes = [2, 16], strides = [1, 1]} : vector<2x64xf32> to vector<2x16xf32>
    %216 = arith.negf %215 : vector<2x16xf32>
    %217 = math.exp %216 : vector<2x16xf32>
    %cst_44 = arith.constant 1.000000e+00 : f32
    %218 = vector.broadcast %cst_44 : f32 to vector<2x16xf32>
    %219 = arith.addf %218, %217 : vector<2x16xf32>
    %220 = arith.divf %218, %219 : vector<2x16xf32>
    %221 = vector.extract_strided_slice %214 {offsets = [0, 16], sizes = [2, 16], strides = [1, 1]} : vector<2x64xf32> to vector<2x16xf32>
    %222 = arith.negf %221 : vector<2x16xf32>
    %223 = math.exp %222 : vector<2x16xf32>
    %cst_45 = arith.constant 1.000000e+00 : f32
    %224 = vector.broadcast %cst_45 : f32 to vector<2x16xf32>
    %225 = arith.addf %224, %223 : vector<2x16xf32>
    %226 = arith.divf %224, %225 : vector<2x16xf32>
    %227 = vector.extract_strided_slice %214 {offsets = [0, 32], sizes = [2, 16], strides = [1, 1]} : vector<2x64xf32> to vector<2x16xf32>
    %228 = math.tanh %227 : vector<2x16xf32>
    %229 = vector.extract_strided_slice %214 {offsets = [0, 48], sizes = [2, 16], strides = [1, 1]} : vector<2x64xf32> to vector<2x16xf32>
    %230 = arith.negf %229 : vector<2x16xf32>
    %231 = math.exp %230 : vector<2x16xf32>
    %cst_46 = arith.constant 1.000000e+00 : f32
    %232 = vector.broadcast %cst_46 : f32 to vector<2x16xf32>
    %233 = arith.addf %232, %231 : vector<2x16xf32>
    %234 = arith.divf %232, %233 : vector<2x16xf32>
    %235 = arith.mulf %226, %209 : vector<2x16xf32>
    %236 = arith.mulf %220, %228 : vector<2x16xf32>
    %237 = arith.addf %235, %236 : vector<2x16xf32>
    %238 = math.tanh %237 : vector<2x16xf32>
    %239 = arith.mulf %234, %238 : vector<2x16xf32>
    %c0_47 = arith.constant 0 : index
    %c0_48 = arith.constant 0 : index
    %240 = vector.load %arg9[%c0_47, %c0_48] : memref<16x128xf32, #tpu.memory_space<vmem>>, vector<16x128xf32>
    %cst_49 = arith.constant dense<0.000000e+00> : vector<2x128xf32>
    %241 = tpu.matmul %239, %240, %cst_49 {dimension_numbers = #tpu.dot_dimension_numbers<[1], [0], [0], [1], [0, 0, 1, 1], [], []>} : vector<2x16xf32>, vector<16x128xf32>, vector<2x128xf32> -> vector<2x128xf32>
    %c0_50 = arith.constant 0 : index
    %c0_51 = arith.constant 0 : index
    %242 = vector.load %arg1[%c0_50, %c0_51] : memref<12x9xf32, #tpu.memory_space<vmem>>, vector<12x9xf32>
    %c0_52 = arith.constant 0 : index
    %c0_53 = arith.constant 0 : index
    %243 = vector.load %arg8[%c0_52, %c0_53] : memref<9x128xf32, #tpu.memory_space<vmem>>, vector<9x128xf32>
    %cst_54 = arith.constant dense<0.000000e+00> : vector<12x128xf32>
    %244 = tpu.matmul %242, %243, %cst_54 {dimension_numbers = #tpu.dot_dimension_numbers<[1], [0], [0], [1], [0, 0, 1, 1], [], []>} : vector<12x9xf32>, vector<9x128xf32>, vector<12x128xf32> -> vector<12x128xf32>
    %245 = tpu.iota {dimensions = array<i32: 0>} : vector<12x2xi32>
    %246 = tpu.iota {dimensions = array<i32: 1>} : vector<12x2xi32>
    %c2_i32 = arith.constant 2 : i32
    %c0_i32 = arith.constant 0 : i32
    %247 = arith.cmpi eq, %c2_i32, %c0_i32 : i32
    %c1_i32 = arith.constant 1 : i32
    %248 = arith.select %247, %c1_i32, %c2_i32 : i32
    %249 = vector.broadcast %248 : i32 to vector<12x2xi32>
    %250 = arith.remsi %245, %249 : vector<12x2xi32>
    %c0_i32_55 = arith.constant 0 : i32
    %251 = vector.broadcast %c0_i32_55 : i32 to vector<12x2xi32>
    %252 = arith.cmpi ne, %250, %251 : vector<12x2xi32>
    %c0_i32_56 = arith.constant 0 : i32
    %253 = vector.broadcast %c0_i32_56 : i32 to vector<12x2xi32>
    %254 = arith.cmpi slt, %250, %253 : vector<12x2xi32>
    %c0_i32_57 = arith.constant 0 : i32
    %255 = arith.cmpi slt, %248, %c0_i32_57 : i32
    %256 = vector.broadcast %255 : i1 to vector<12x2xi1>
    %257 = vector.broadcast %256 : vector<12x2xi1> to vector<12x2xi1>
    %258 = arith.xori %254, %257 : vector<12x2xi1>
    %259 = arith.andi %258, %252 : vector<12x2xi1>
    %260 = vector.broadcast %248 : i32 to vector<12x2xi32>
    %261 = arith.addi %250, %260 : vector<12x2xi32>
    %262 = arith.select %259, %261, %250 : vector<12x2xi1>, vector<12x2xi32>
    %263 = arith.cmpi eq, %262, %246 : vector<12x2xi32>
    %cst_58 = arith.constant 1.000000e+00 : f32
    %cst_59 = arith.constant 0.000000e+00 : f32
    %264 = vector.broadcast %cst_58 : f32 to vector<12x2xf32>
    %265 = vector.broadcast %cst_59 : f32 to vector<12x2xf32>
    %266 = arith.select %263, %264, %265 : vector<12x2xi1>, vector<12x2xf32>
    %cst_60 = arith.constant dense<0.000000e+00> : vector<12x128xf32>
    %267 = tpu.matmul %266, %241, %cst_60 {dimension_numbers = #tpu.dot_dimension_numbers<[1], [0], [0], [1], [0, 0, 1, 1], [], []>} : vector<12x2xf32>, vector<2x128xf32>, vector<12x128xf32> -> vector<12x128xf32>
    %268 = arith.addf %244, %267 : vector<12x128xf32>
    %c0_61 = arith.constant 0 : index
    %c0_62 = arith.constant 0 : index
    %269 = vector.load %arg10[%c0_61, %c0_62] : memref<1x128xf32, #tpu.memory_space<vmem>>, vector<1x128xf32>
    %270 = vector.broadcast %269 : vector<1x128xf32> to vector<12x128xf32>
    %271 = arith.addf %268, %270 : vector<12x128xf32>
    %cst_63 = arith.constant 0.000000e+00 : f32
    %272 = vector.broadcast %cst_63 : f32 to vector<12x128xf32>
    %273 = arith.maximumf %271, %272 : vector<12x128xf32>
    %c0_64 = arith.constant 0 : index
    %c0_65 = arith.constant 0 : index
    %274 = vector.load %arg11[%c0_64, %c0_65] : memref<128x64xf32, #tpu.memory_space<vmem>>, vector<128x64xf32>
    %cst_66 = arith.constant dense<0.000000e+00> : vector<12x64xf32>
    %275 = tpu.matmul %273, %274, %cst_66 {dimension_numbers = #tpu.dot_dimension_numbers<[1], [0], [0], [1], [0, 0, 1, 1], [], []>} : vector<12x128xf32>, vector<128x64xf32>, vector<12x64xf32> -> vector<12x64xf32>
    %c0_67 = arith.constant 0 : index
    %c0_68 = arith.constant 0 : index
    %276 = vector.load %arg13[%c0_67, %c0_68] : memref<1x64xf32, #tpu.memory_space<vmem>>, vector<1x64xf32>
    %277 = vector.broadcast %276 : vector<1x64xf32> to vector<12x64xf32>
    %278 = arith.addf %275, %277 : vector<12x64xf32>
    %c0_69 = arith.constant 0 : index
    %c0_70 = arith.constant 0 : index
    %279 = vector.load %arg12[%c0_69, %c0_70] : memref<16x64xf32, #tpu.memory_space<vmem>>, vector<16x64xf32>
    %cst_71 = arith.constant 0.000000e+00 : f32
    %280 = vector.broadcast %cst_71 : f32 to vector<2x16xf32>
    %cst_72 = arith.constant 0.000000e+00 : f32
    %281 = vector.broadcast %cst_72 : f32 to vector<2x16xf32>
    %282 = vector.extract_strided_slice %278 {offsets = [0, 0], sizes = [2, 64], strides = [1, 1]} : vector<12x64xf32> to vector<2x64xf32>
    %cst_73 = arith.constant dense<0.000000e+00> : vector<2x64xf32>
    %283 = tpu.matmul %280, %279, %cst_73 {dimension_numbers = #tpu.dot_dimension_numbers<[1], [0], [0], [1], [0, 0, 1, 1], [], []>} : vector<2x16xf32>, vector<16x64xf32>, vector<2x64xf32> -> vector<2x64xf32>
    %284 = arith.addf %282, %283 : vector<2x64xf32>
    %285 = vector.extract_strided_slice %284 {offsets = [0, 0], sizes = [2, 16], strides = [1, 1]} : vector<2x64xf32> to vector<2x16xf32>
    %286 = arith.negf %285 : vector<2x16xf32>
    %287 = math.exp %286 : vector<2x16xf32>
    %cst_74 = arith.constant 1.000000e+00 : f32
    %288 = vector.broadcast %cst_74 : f32 to vector<2x16xf32>
    %289 = arith.addf %288, %287 : vector<2x16xf32>
    %290 = arith.divf %288, %289 : vector<2x16xf32>
    %291 = vector.extract_strided_slice %284 {offsets = [0, 16], sizes = [2, 16], strides = [1, 1]} : vector<2x64xf32> to vector<2x16xf32>
    %292 = arith.negf %291 : vector<2x16xf32>
    %293 = math.exp %292 : vector<2x16xf32>
    %cst_75 = arith.constant 1.000000e+00 : f32
    %294 = vector.broadcast %cst_75 : f32 to vector<2x16xf32>
    %295 = arith.addf %294, %293 : vector<2x16xf32>
    %296 = arith.divf %294, %295 : vector<2x16xf32>
    %297 = vector.extract_strided_slice %284 {offsets = [0, 32], sizes = [2, 16], strides = [1, 1]} : vector<2x64xf32> to vector<2x16xf32>
    %298 = math.tanh %297 : vector<2x16xf32>
    %299 = vector.extract_strided_slice %284 {offsets = [0, 48], sizes = [2, 16], strides = [1, 1]} : vector<2x64xf32> to vector<2x16xf32>
    %300 = arith.negf %299 : vector<2x16xf32>
    %301 = math.exp %300 : vector<2x16xf32>
    %cst_76 = arith.constant 1.000000e+00 : f32
    %302 = vector.broadcast %cst_76 : f32 to vector<2x16xf32>
    %303 = arith.addf %302, %301 : vector<2x16xf32>
    %304 = arith.divf %302, %303 : vector<2x16xf32>
    %305 = arith.mulf %296, %281 : vector<2x16xf32>
    %306 = arith.mulf %290, %298 : vector<2x16xf32>
    %307 = arith.addf %305, %306 : vector<2x16xf32>
    %308 = math.tanh %307 : vector<2x16xf32>
    %309 = arith.mulf %304, %308 : vector<2x16xf32>
    %310 = vector.extract_strided_slice %278 {offsets = [2, 0], sizes = [2, 64], strides = [1, 1]} : vector<12x64xf32> to vector<2x64xf32>
    %cst_77 = arith.constant dense<0.000000e+00> : vector<2x64xf32>
    %311 = tpu.matmul %309, %279, %cst_77 {dimension_numbers = #tpu.dot_dimension_numbers<[1], [0], [0], [1], [0, 0, 1, 1], [], []>} : vector<2x16xf32>, vector<16x64xf32>, vector<2x64xf32> -> vector<2x64xf32>
    %312 = arith.addf %310, %311 : vector<2x64xf32>
    %313 = vector.extract_strided_slice %312 {offsets = [0, 0], sizes = [2, 16], strides = [1, 1]} : vector<2x64xf32> to vector<2x16xf32>
    %314 = arith.negf %313 : vector<2x16xf32>
    %315 = math.exp %314 : vector<2x16xf32>
    %cst_78 = arith.constant 1.000000e+00 : f32
    %316 = vector.broadcast %cst_78 : f32 to vector<2x16xf32>
    %317 = arith.addf %316, %315 : vector<2x16xf32>
    %318 = arith.divf %316, %317 : vector<2x16xf32>
    %319 = vector.extract_strided_slice %312 {offsets = [0, 16], sizes = [2, 16], strides = [1, 1]} : vector<2x64xf32> to vector<2x16xf32>
    %320 = arith.negf %319 : vector<2x16xf32>
    %321 = math.exp %320 : vector<2x16xf32>
    %cst_79 = arith.constant 1.000000e+00 : f32
    %322 = vector.broadcast %cst_79 : f32 to vector<2x16xf32>
    %323 = arith.addf %322, %321 : vector<2x16xf32>
    %324 = arith.divf %322, %323 : vector<2x16xf32>
    %325 = vector.extract_strided_slice %312 {offsets = [0, 32], sizes = [2, 16], strides = [1, 1]} : vector<2x64xf32> to vector<2x16xf32>
    %326 = math.tanh %325 : vector<2x16xf32>
    %327 = vector.extract_strided_slice %312 {offsets = [0, 48], sizes = [2, 16], strides = [1, 1]} : vector<2x64xf32> to vector<2x16xf32>
    %328 = arith.negf %327 : vector<2x16xf32>
    %329 = math.exp %328 : vector<2x16xf32>
    %cst_80 = arith.constant 1.000000e+00 : f32
    %330 = vector.broadcast %cst_80 : f32 to vector<2x16xf32>
    %331 = arith.addf %330, %329 : vector<2x16xf32>
    %332 = arith.divf %330, %331 : vector<2x16xf32>
    %333 = arith.mulf %324, %307 : vector<2x16xf32>
    %334 = arith.mulf %318, %326 : vector<2x16xf32>
    %335 = arith.addf %333, %334 : vector<2x16xf32>
    %336 = math.tanh %335 : vector<2x16xf32>
    %337 = arith.mulf %332, %336 : vector<2x16xf32>
    %338 = vector.extract_strided_slice %278 {offsets = [4, 0], sizes = [2, 64], strides = [1, 1]} : vector<12x64xf32> to vector<2x64xf32>
    %cst_81 = arith.constant dense<0.000000e+00> : vector<2x64xf32>
    %339 = tpu.matmul %337, %279, %cst_81 {dimension_numbers = #tpu.dot_dimension_numbers<[1], [0], [0], [1], [0, 0, 1, 1], [], []>} : vector<2x16xf32>, vector<16x64xf32>, vector<2x64xf32> -> vector<2x64xf32>
    %340 = arith.addf %338, %339 : vector<2x64xf32>
    %341 = vector.extract_strided_slice %340 {offsets = [0, 0], sizes = [2, 16], strides = [1, 1]} : vector<2x64xf32> to vector<2x16xf32>
    %342 = arith.negf %341 : vector<2x16xf32>
    %343 = math.exp %342 : vector<2x16xf32>
    %cst_82 = arith.constant 1.000000e+00 : f32
    %344 = vector.broadcast %cst_82 : f32 to vector<2x16xf32>
    %345 = arith.addf %344, %343 : vector<2x16xf32>
    %346 = arith.divf %344, %345 : vector<2x16xf32>
    %347 = vector.extract_strided_slice %340 {offsets = [0, 16], sizes = [2, 16], strides = [1, 1]} : vector<2x64xf32> to vector<2x16xf32>
    %348 = arith.negf %347 : vector<2x16xf32>
    %349 = math.exp %348 : vector<2x16xf32>
    %cst_83 = arith.constant 1.000000e+00 : f32
    %350 = vector.broadcast %cst_83 : f32 to vector<2x16xf32>
    %351 = arith.addf %350, %349 : vector<2x16xf32>
    %352 = arith.divf %350, %351 : vector<2x16xf32>
    %353 = vector.extract_strided_slice %340 {offsets = [0, 32], sizes = [2, 16], strides = [1, 1]} : vector<2x64xf32> to vector<2x16xf32>
    %354 = math.tanh %353 : vector<2x16xf32>
    %355 = vector.extract_strided_slice %340 {offsets = [0, 48], sizes = [2, 16], strides = [1, 1]} : vector<2x64xf32> to vector<2x16xf32>
    %356 = arith.negf %355 : vector<2x16xf32>
    %357 = math.exp %356 : vector<2x16xf32>
    %cst_84 = arith.constant 1.000000e+00 : f32
    %358 = vector.broadcast %cst_84 : f32 to vector<2x16xf32>
    %359 = arith.addf %358, %357 : vector<2x16xf32>
    %360 = arith.divf %358, %359 : vector<2x16xf32>
    %361 = arith.mulf %352, %335 : vector<2x16xf32>
    %362 = arith.mulf %346, %354 : vector<2x16xf32>
    %363 = arith.addf %361, %362 : vector<2x16xf32>
    %364 = math.tanh %363 : vector<2x16xf32>
    %365 = arith.mulf %360, %364 : vector<2x16xf32>
    %366 = vector.extract_strided_slice %278 {offsets = [6, 0], sizes = [2, 64], strides = [1, 1]} : vector<12x64xf32> to vector<2x64xf32>
    %cst_85 = arith.constant dense<0.000000e+00> : vector<2x64xf32>
    %367 = tpu.matmul %365, %279, %cst_85 {dimension_numbers = #tpu.dot_dimension_numbers<[1], [0], [0], [1], [0, 0, 1, 1], [], []>} : vector<2x16xf32>, vector<16x64xf32>, vector<2x64xf32> -> vector<2x64xf32>
    %368 = arith.addf %366, %367 : vector<2x64xf32>
    %369 = vector.extract_strided_slice %368 {offsets = [0, 0], sizes = [2, 16], strides = [1, 1]} : vector<2x64xf32> to vector<2x16xf32>
    %370 = arith.negf %369 : vector<2x16xf32>
    %371 = math.exp %370 : vector<2x16xf32>
    %cst_86 = arith.constant 1.000000e+00 : f32
    %372 = vector.broadcast %cst_86 : f32 to vector<2x16xf32>
    %373 = arith.addf %372, %371 : vector<2x16xf32>
    %374 = arith.divf %372, %373 : vector<2x16xf32>
    %375 = vector.extract_strided_slice %368 {offsets = [0, 16], sizes = [2, 16], strides = [1, 1]} : vector<2x64xf32> to vector<2x16xf32>
    %376 = arith.negf %375 : vector<2x16xf32>
    %377 = math.exp %376 : vector<2x16xf32>
    %cst_87 = arith.constant 1.000000e+00 : f32
    %378 = vector.broadcast %cst_87 : f32 to vector<2x16xf32>
    %379 = arith.addf %378, %377 : vector<2x16xf32>
    %380 = arith.divf %378, %379 : vector<2x16xf32>
    %381 = vector.extract_strided_slice %368 {offsets = [0, 32], sizes = [2, 16], strides = [1, 1]} : vector<2x64xf32> to vector<2x16xf32>
    %382 = math.tanh %381 : vector<2x16xf32>
    %383 = vector.extract_strided_slice %368 {offsets = [0, 48], sizes = [2, 16], strides = [1, 1]} : vector<2x64xf32> to vector<2x16xf32>
    %384 = arith.negf %383 : vector<2x16xf32>
    %385 = math.exp %384 : vector<2x16xf32>
    %cst_88 = arith.constant 1.000000e+00 : f32
    %386 = vector.broadcast %cst_88 : f32 to vector<2x16xf32>
    %387 = arith.addf %386, %385 : vector<2x16xf32>
    %388 = arith.divf %386, %387 : vector<2x16xf32>
    %389 = arith.mulf %380, %363 : vector<2x16xf32>
    %390 = arith.mulf %374, %382 : vector<2x16xf32>
    %391 = arith.addf %389, %390 : vector<2x16xf32>
    %392 = math.tanh %391 : vector<2x16xf32>
    %393 = arith.mulf %388, %392 : vector<2x16xf32>
    %394 = vector.extract_strided_slice %278 {offsets = [8, 0], sizes = [2, 64], strides = [1, 1]} : vector<12x64xf32> to vector<2x64xf32>
    %cst_89 = arith.constant dense<0.000000e+00> : vector<2x64xf32>
    %395 = tpu.matmul %393, %279, %cst_89 {dimension_numbers = #tpu.dot_dimension_numbers<[1], [0], [0], [1], [0, 0, 1, 1], [], []>} : vector<2x16xf32>, vector<16x64xf32>, vector<2x64xf32> -> vector<2x64xf32>
    %396 = arith.addf %394, %395 : vector<2x64xf32>
    %397 = vector.extract_strided_slice %396 {offsets = [0, 0], sizes = [2, 16], strides = [1, 1]} : vector<2x64xf32> to vector<2x16xf32>
    %398 = arith.negf %397 : vector<2x16xf32>
    %399 = math.exp %398 : vector<2x16xf32>
    %cst_90 = arith.constant 1.000000e+00 : f32
    %400 = vector.broadcast %cst_90 : f32 to vector<2x16xf32>
    %401 = arith.addf %400, %399 : vector<2x16xf32>
    %402 = arith.divf %400, %401 : vector<2x16xf32>
    %403 = vector.extract_strided_slice %396 {offsets = [0, 16], sizes = [2, 16], strides = [1, 1]} : vector<2x64xf32> to vector<2x16xf32>
    %404 = arith.negf %403 : vector<2x16xf32>
    %405 = math.exp %404 : vector<2x16xf32>
    %cst_91 = arith.constant 1.000000e+00 : f32
    %406 = vector.broadcast %cst_91 : f32 to vector<2x16xf32>
    %407 = arith.addf %406, %405 : vector<2x16xf32>
    %408 = arith.divf %406, %407 : vector<2x16xf32>
    %409 = vector.extract_strided_slice %396 {offsets = [0, 32], sizes = [2, 16], strides = [1, 1]} : vector<2x64xf32> to vector<2x16xf32>
    %410 = math.tanh %409 : vector<2x16xf32>
    %411 = vector.extract_strided_slice %396 {offsets = [0, 48], sizes = [2, 16], strides = [1, 1]} : vector<2x64xf32> to vector<2x16xf32>
    %412 = arith.negf %411 : vector<2x16xf32>
    %413 = math.exp %412 : vector<2x16xf32>
    %cst_92 = arith.constant 1.000000e+00 : f32
    %414 = vector.broadcast %cst_92 : f32 to vector<2x16xf32>
    %415 = arith.addf %414, %413 : vector<2x16xf32>
    %416 = arith.divf %414, %415 : vector<2x16xf32>
    %417 = arith.mulf %408, %391 : vector<2x16xf32>
    %418 = arith.mulf %402, %410 : vector<2x16xf32>
    %419 = arith.addf %417, %418 : vector<2x16xf32>
    %420 = math.tanh %419 : vector<2x16xf32>
    %421 = arith.mulf %416, %420 : vector<2x16xf32>
    %422 = vector.extract_strided_slice %278 {offsets = [10, 0], sizes = [2, 64], strides = [1, 1]} : vector<12x64xf32> to vector<2x64xf32>
    %cst_93 = arith.constant dense<0.000000e+00> : vector<2x64xf32>
    %423 = tpu.matmul %421, %279, %cst_93 {dimension_numbers = #tpu.dot_dimension_numbers<[1], [0], [0], [1], [0, 0, 1, 1], [], []>} : vector<2x16xf32>, vector<16x64xf32>, vector<2x64xf32> -> vector<2x64xf32>
    %424 = arith.addf %422, %423 : vector<2x64xf32>
    %425 = vector.extract_strided_slice %424 {offsets = [0, 0], sizes = [2, 16], strides = [1, 1]} : vector<2x64xf32> to vector<2x16xf32>
    %426 = arith.negf %425 : vector<2x16xf32>
    %427 = math.exp %426 : vector<2x16xf32>
    %cst_94 = arith.constant 1.000000e+00 : f32
    %428 = vector.broadcast %cst_94 : f32 to vector<2x16xf32>
    %429 = arith.addf %428, %427 : vector<2x16xf32>
    %430 = arith.divf %428, %429 : vector<2x16xf32>
    %431 = vector.extract_strided_slice %424 {offsets = [0, 16], sizes = [2, 16], strides = [1, 1]} : vector<2x64xf32> to vector<2x16xf32>
    %432 = arith.negf %431 : vector<2x16xf32>
    %433 = math.exp %432 : vector<2x16xf32>
    %cst_95 = arith.constant 1.000000e+00 : f32
    %434 = vector.broadcast %cst_95 : f32 to vector<2x16xf32>
    %435 = arith.addf %434, %433 : vector<2x16xf32>
    %436 = arith.divf %434, %435 : vector<2x16xf32>
    %437 = vector.extract_strided_slice %424 {offsets = [0, 32], sizes = [2, 16], strides = [1, 1]} : vector<2x64xf32> to vector<2x16xf32>
    %438 = math.tanh %437 : vector<2x16xf32>
    %439 = vector.extract_strided_slice %424 {offsets = [0, 48], sizes = [2, 16], strides = [1, 1]} : vector<2x64xf32> to vector<2x16xf32>
    %440 = arith.negf %439 : vector<2x16xf32>
    %441 = math.exp %440 : vector<2x16xf32>
    %cst_96 = arith.constant 1.000000e+00 : f32
    %442 = vector.broadcast %cst_96 : f32 to vector<2x16xf32>
    %443 = arith.addf %442, %441 : vector<2x16xf32>
    %444 = arith.divf %442, %443 : vector<2x16xf32>
    %445 = arith.mulf %436, %419 : vector<2x16xf32>
    %446 = arith.mulf %430, %438 : vector<2x16xf32>
    %447 = arith.addf %445, %446 : vector<2x16xf32>
    %448 = math.tanh %447 : vector<2x16xf32>
    %449 = arith.mulf %444, %448 : vector<2x16xf32>
    %c0_97 = arith.constant 0 : index
    %c0_98 = arith.constant 0 : index
    %450 = vector.load %arg2[%c0_97, %c0_98] : memref<2x8xf32, #tpu.memory_space<vmem>>, vector<2x8xf32>
    %c0_99 = arith.constant 0 : index
    %c0_100 = arith.constant 0 : index
    %451 = vector.load %arg14[%c0_99, %c0_100] : memref<8x256xf32, #tpu.memory_space<vmem>>, vector<8x256xf32>
    %c0_101 = arith.constant 0 : index
    %c0_102 = arith.constant 0 : index
    %452 = vector.load %arg15[%c0_101, %c0_102] : memref<16x256xf32, #tpu.memory_space<vmem>>, vector<16x256xf32>
    %c0_103 = arith.constant 0 : index
    %c0_104 = arith.constant 0 : index
    %453 = vector.load %arg16[%c0_103, %c0_104] : memref<16x256xf32, #tpu.memory_space<vmem>>, vector<16x256xf32>
    %c0_105 = arith.constant 0 : index
    %c0_106 = arith.constant 0 : index
    %454 = vector.load %arg17[%c0_105, %c0_106] : memref<1x256xf32, #tpu.memory_space<vmem>>, vector<1x256xf32>
    %c0_107 = arith.constant 0 : index
    %c0_108 = arith.constant 0 : index
    %455 = vector.load %arg18[%c0_107, %c0_108] : memref<256x5xf32, #tpu.memory_space<vmem>>, vector<256x5xf32>
    %c0_109 = arith.constant 0 : index
    %c0_110 = arith.constant 0 : index
    %456 = vector.load %arg19[%c0_109, %c0_110] : memref<1x5xf32, #tpu.memory_space<vmem>>, vector<1x5xf32>
    %cst_111 = arith.constant dense<0.000000e+00> : vector<2x256xf32>
    %457 = tpu.matmul %450, %451, %cst_111 {dimension_numbers = #tpu.dot_dimension_numbers<[1], [0], [0], [1], [0, 0, 1, 1], [], []>} : vector<2x8xf32>, vector<8x256xf32>, vector<2x256xf32> -> vector<2x256xf32>
    %cst_112 = arith.constant dense<0.000000e+00> : vector<2x256xf32>
    %458 = tpu.matmul %239, %452, %cst_112 {dimension_numbers = #tpu.dot_dimension_numbers<[1], [0], [0], [1], [0, 0, 1, 1], [], []>} : vector<2x16xf32>, vector<16x256xf32>, vector<2x256xf32> -> vector<2x256xf32>
    %459 = arith.addf %457, %458 : vector<2x256xf32>
    %460 = vector.broadcast %454 : vector<1x256xf32> to vector<2x256xf32>
    %461 = arith.addf %459, %460 : vector<2x256xf32>
    %cst_113 = arith.constant dense<0.000000e+00> : vector<2x256xf32>
    %462 = tpu.matmul %449, %453, %cst_113 {dimension_numbers = #tpu.dot_dimension_numbers<[1], [0], [0], [1], [0, 0, 1, 1], [], []>} : vector<2x16xf32>, vector<16x256xf32>, vector<2x256xf32> -> vector<2x256xf32>
    %463 = arith.addf %461, %462 : vector<2x256xf32>
    %cst_114 = arith.constant 0.000000e+00 : f32
    %464 = vector.broadcast %cst_114 : f32 to vector<2x256xf32>
    %465 = arith.maximumf %463, %464 : vector<2x256xf32>
    %cst_115 = arith.constant dense<0.000000e+00> : vector<2x5xf32>
    %466 = tpu.matmul %465, %455, %cst_115 {dimension_numbers = #tpu.dot_dimension_numbers<[1], [0], [0], [1], [0, 0, 1, 1], [], []>} : vector<2x256xf32>, vector<256x5xf32>, vector<2x5xf32> -> vector<2x5xf32>
    %467 = vector.broadcast %456 : vector<1x5xf32> to vector<2x5xf32>
    %468 = arith.addf %466, %467 : vector<2x5xf32>
    %cst_116 = arith.constant dense<0xFF800000> : vector<2xf32>
    %469 = vector.multi_reduction <maximumf>, %468, %cst_116 [1] : vector<2x5xf32> to vector<2xf32>
    %470 = vector.shape_cast %469 : vector<2xf32> to vector<2x1xf32>
    %471 = vector.broadcast %470 : vector<2x1xf32> to vector<2x5xf32>
    %472 = arith.subf %468, %471 : vector<2x5xf32>
    %473 = math.exp %472 : vector<2x5xf32>
    %cst_117 = arith.constant dense<0.000000e+00> : vector<2xf32>
    %474 = vector.multi_reduction <add>, %473, %cst_117 [1] : vector<2x5xf32> to vector<2xf32>
    %475 = vector.shape_cast %474 : vector<2xf32> to vector<2x1xf32>
    %476 = tpu.reciprocal %475 : vector<2x1xf32> -> vector<2x1xf32>
    %477 = vector.broadcast %476 : vector<2x1xf32> to vector<2x5xf32>
    %478 = arith.mulf %473, %477 : vector<2x5xf32>
    %c0_118 = arith.constant 0 : index
    %c0_119 = arith.constant 0 : index
    %479 = vector.load %arg20[%c0_118, %c0_119] : memref<2x5xf32, #tpu.memory_space<vmem>>, vector<2x5xf32>
    tpu.vector_store %arg20[%c0_118, %c0_119], %478 {strides = array<i32>} : memref<2x5xf32, #tpu.memory_space<vmem>>, vector<2x5xf32>,
    return
  }
}

</mosaic_0001>

<llo_original>
// kernel: tpu_custom_call.1
$region0: #{tpu_custom_call.1}
  #allocation0 [shape = 'u32[]', space=smem, size = 0x4, offset = 0x4, fixed_abs, tag = 'smem constant byte address 0x4 - core index']
  #allocation1 [shape = 'u32[72,128]{1,0:T(1,128)}', space=vmem, size = 0x9000, scoped, tag = 'internal scratch']
  %s0 = inlined_call_operand.vmem [shape: f32[16,9], index: 0, kind: input, shape index: {}]
  %s1 = inlined_call_operand.vmem [shape: f32[12,9], index: 1, kind: input, shape index: {}]
  %s2 = inlined_call_operand.vmem [shape: f32[2,8], index: 2, kind: input, shape index: {}]
  %s3 = inlined_call_operand.vmem [shape: f32[9,128], index: 3, kind: input, shape index: {}]
  %s4 = inlined_call_operand.vmem [shape: f32[1,128], index: 4, kind: input, shape index: {}]
  %s5 = inlined_call_operand.vmem [shape: f32[128,64], index: 5, kind: input, shape index: {}]
  %s6 = inlined_call_operand.vmem [shape: f32[16,64], index: 6, kind: input, shape index: {}]
  %s7 = inlined_call_operand.vmem [shape: f32[1,64], index: 7, kind: input, shape index: {}]
  %s8 = inlined_call_operand.vmem [shape: f32[9,128], index: 8, kind: input, shape index: {}]
  %s9 = inlined_call_operand.vmem [shape: f32[16,128], index: 9, kind: input, shape index: {}]
  %s10 = inlined_call_operand.vmem [shape: f32[1,128], index: 10, kind: input, shape index: {}]
  %s11 = inlined_call_operand.vmem [shape: f32[128,64], index: 11, kind: input, shape index: {}]
  %s12 = inlined_call_operand.vmem [shape: f32[16,64], index: 12, kind: input, shape index: {}]
  %s13 = inlined_call_operand.vmem [shape: f32[1,64], index: 13, kind: input, shape index: {}]
  %s14 = inlined_call_operand.vmem [shape: f32[8,256], index: 14, kind: input, shape index: {}]
  %s15 = inlined_call_operand.vmem [shape: f32[16,256], index: 15, kind: input, shape index: {}]
  %s16 = inlined_call_operand.vmem [shape: f32[16,256], index: 16, kind: input, shape index: {}]
  %s17 = inlined_call_operand.vmem [shape: f32[1,256], index: 17, kind: input, shape index: {}]
  %s18 = inlined_call_operand.vmem [shape: f32[256,5], index: 18, kind: input, shape index: {}]
  %s19 = inlined_call_operand.vmem [shape: f32[1,5], index: 19, kind: input, shape index: {}]
  %s20 = inlined_call_operand.hbm [shape: f32[2,5], index: 20, kind: output, shape index: {}]
  %s21 = sld [smem:[#allocation0]]
  $region90: #{tpu_custom_call.1} parent=0
    _
  %s23 = ssub.s32 1, %s21
  %s24 = scalar_select 0, %s23, %s21
  $region1: #{tpu_custom_call.1} parent=0
    #allocation2 [shape = 'u8[1024]{0}', space=vmem, size = 0x400, scoped, tag = 'output window, operand 0, single buffered']
    #allocation3 [shape = 's32[1]{0}', space=sflag, size = 0x4, scoped, tag = 'scoped memory for tpu_custom_call.1']
    %25 = vsyncpa [#allocation3], 0
    // Predicated region
    $region2: #{tpu_custom_call.1} parent=1 // pred_check
      _
    $region3: #{tpu_custom_call.1} parent=1 // pred_check_branch
      %27 = sbr.rel (0) target = $region5
    $region4: #{tpu_custom_call.1} parent=1 // pred_region
      _
    $region5: #{tpu_custom_call.1} parent=1 // pred_fallthru
      _
    // Predicated region
    $region6: #{tpu_custom_call.1} parent=1 // pred_check
      _
    $region7: #{tpu_custom_call.1} parent=1 // pred_check_branch
      %29 = sbr.rel (0) target = $region9
    $region8: #{tpu_custom_call.1} parent=1 // pred_region
      _
    $region9: #{tpu_custom_call.1} parent=1 // pred_fallthru
      _
    // Predicated region
    $region10: #{tpu_custom_call.1} parent=1 // pred_check
      _
    $region11: #{tpu_custom_call.1} parent=1 // pred_check_branch
      %31 = sbr.rel (0) target = $region13
    $region12: #{tpu_custom_call.1} parent=1 // pred_region
      _
    $region13: #{tpu_custom_call.1} parent=1 // pred_fallthru
      _
    // Predicated region
    $region14: #{tpu_custom_call.1} parent=1 // pred_check
      _
    $region15: #{tpu_custom_call.1} parent=1 // pred_check_branch
      %33 = sbr.rel (0) target = $region17
    $region16: #{tpu_custom_call.1} parent=1 // pred_region
      _
    $region17: #{tpu_custom_call.1} parent=1 // pred_fallthru
      _
    // Predicated region
    $region18: #{tpu_custom_call.1} parent=1 // pred_check
      _
    $region19: #{tpu_custom_call.1} parent=1 // pred_check_branch
      %35 = sbr.rel (0) target = $region21
    $region20: #{tpu_custom_call.1} parent=1 // pred_region
      _
    $region21: #{tpu_custom_call.1} parent=1 // pred_fallthru
      _
    // Predicated region
    $region22: #{tpu_custom_call.1} parent=1 // pred_check
      _
    $region23: #{tpu_custom_call.1} parent=1 // pred_check_branch
      %37 = sbr.rel (0) target = $region25
    $region24: #{tpu_custom_call.1} parent=1 // pred_region
      _
    $region25: #{tpu_custom_call.1} parent=1 // pred_fallthru
      _
    // Predicated region
    $region26: #{tpu_custom_call.1} parent=1 // pred_check
      _
    $region27: #{tpu_custom_call.1} parent=1 // pred_check_branch
      %39 = sbr.rel (0) target = $region29
    $region28: #{tpu_custom_call.1} parent=1 // pred_region
      _
    $region29: #{tpu_custom_call.1} parent=1 // pred_fallthru
      _
    // Predicated region
    $region30: #{tpu_custom_call.1} parent=1 // pred_check
      _
    $region31: #{tpu_custom_call.1} parent=1 // pred_check_branch
      %41 = sbr.rel (0) target = $region33
    $region32: #{tpu_custom_call.1} parent=1 // pred_region
      _
    $region33: #{tpu_custom_call.1} parent=1 // pred_fallthru
      _
    // Predicated region
    $region34: #{tpu_custom_call.1} parent=1 // pred_check
      _
    $region35: #{tpu_custom_call.1} parent=1 // pred_check_branch
      %43 = sbr.rel (0) target = $region37
    $region36: #{tpu_custom_call.1} parent=1 // pred_region
      _
    $region37: #{tpu_custom_call.1} parent=1 // pred_fallthru
      _
    // Predicated region
    $region38: #{tpu_custom_call.1} parent=1 // pred_check
      _
    $region39: #{tpu_custom_call.1} parent=1 // pred_check_branch
      %45 = sbr.rel (0) target = $region41
    $region40: #{tpu_custom_call.1} parent=1 // pred_region
      _
    $region41: #{tpu_custom_call.1} parent=1 // pred_fallthru
      _
    // Predicated region
    $region42: #{tpu_custom_call.1} parent=1 // pred_check
      _
    $region43: #{tpu_custom_call.1} parent=1 // pred_check_branch
      %47 = sbr.rel (0) target = $region45
    $region44: #{tpu_custom_call.1} parent=1 // pred_region
      _
    $region45: #{tpu_custom_call.1} parent=1 // pred_fallthru
      _
    // Predicated region
    $region46: #{tpu_custom_call.1} parent=1 // pred_check
      _
    $region47: #{tpu_custom_call.1} parent=1 // pred_check_branch
      %49 = sbr.rel (0) target = $region49
    $region48: #{tpu_custom_call.1} parent=1 // pred_region
      _
    $region49: #{tpu_custom_call.1} parent=1 // pred_fallthru
      _
    // Predicated region
    $region50: #{tpu_custom_call.1} parent=1 // pred_check
      _
    $region51: #{tpu_custom_call.1} parent=1 // pred_check_branch
      %51 = sbr.rel (0) target = $region53
    $region52: #{tpu_custom_call.1} parent=1 // pred_region
      _
    $region53: #{tpu_custom_call.1} parent=1 // pred_fallthru
      _
    // Predicated region
    $region54: #{tpu_custom_call.1} parent=1 // pred_check
      _
    $region55: #{tpu_custom_call.1} parent=1 // pred_check_branch
      %53 = sbr.rel (0) target = $region57
    $region56: #{tpu_custom_call.1} parent=1 // pred_region
      _
    $region57: #{tpu_custom_call.1} parent=1 // pred_fallthru
      _
    // Predicated region
    $region58: #{tpu_custom_call.1} parent=1 // pred_check
      _
    $region59: #{tpu_custom_call.1} parent=1 // pred_check_branch
      %55 = sbr.rel (0) target = $region61
    $region60: #{tpu_custom_call.1} parent=1 // pred_region
      _
    $region61: #{tpu_custom_call.1} parent=1 // pred_fallthru
      _
    // Predicated region
    $region62: #{tpu_custom_call.1} parent=1 // pred_check
      _
    $region63: #{tpu_custom_call.1} parent=1 // pred_check_branch
      %57 = sbr.rel (0) target = $region65
    $region64: #{tpu_custom_call.1} parent=1 // pred_region
      _
    $region65: #{tpu_custom_call.1} parent=1 // pred_fallthru
      _
    // Predicated region
    $region66: #{tpu_custom_call.1} parent=1 // pred_check
      _
    $region67: #{tpu_custom_call.1} parent=1 // pred_check_branch
      %59 = sbr.rel (0) target = $region69
    $region68: #{tpu_custom_call.1} parent=1 // pred_region
      _
    $region69: #{tpu_custom_call.1} parent=1 // pred_fallthru
      _
    // Predicated region
    $region70: #{tpu_custom_call.1} parent=1 // pred_check
      _
    $region71: #{tpu_custom_call.1} parent=1 // pred_check_branch
      %61 = sbr.rel (0) target = $region73
    $region72: #{tpu_custom_call.1} parent=1 // pred_region
      _
    $region73: #{tpu_custom_call.1} parent=1 // pred_fallthru
      _
    // Predicated region
    $region74: #{tpu_custom_call.1} parent=1 // pred_check
      _
    $region75: #{tpu_custom_call.1} parent=1 // pred_check_branch
      %63 = sbr.rel (0) target = $region77
    $region76: #{tpu_custom_call.1} parent=1 // pred_region
      _
    $region77: #{tpu_custom_call.1} parent=1 // pred_fallthru
      _
    // Predicated region
    $region78: #{tpu_custom_call.1} parent=1 // pred_check
      _
    $region79: #{tpu_custom_call.1} parent=1 // pred_check_branch
      %65 = sbr.rel (0) target = $region81
    $region80: #{tpu_custom_call.1} parent=1 // pred_region
      _
    $region81: #{tpu_custom_call.1} parent=1 // pred_fallthru
      _
    %v66 = vld [vmem:[%s0] sm:$0xff]
    %v67 = vld [vmem:[%s0 + $0x8] sm:$0xff]
    %v68 = vld [vmem:[%s3] sm:$0xff]
    %v69 = vld [vmem:[%s3 + $0x8] sm:$0x1]
    %v70 = vld [vmem:[%s4] sm:$0x1]
    %v72 = vperm.slane %v70, 0
    %vm74 = vcmask 72704
    %v76 = vsel %vm74, %v66, 0
    %v79 = vsel %vm74, %v67, 0
    %vm81 = vcmask 1040384
    %v83 = vsel %vm81, %v69, 0
    %85 = vmatpush.msra.mxu0 0.0
    %86 = vmatpush.msra.mxu0 0.0
    %87 = vmatpush.msra.mxu0 0.0
    %88 = vmatpush.msra.mxu0 0.0
    %89 = vmatpush.msra.mxu0 0.0
    %90 = vmatpush.msra.mxu0 0.0
    %91 = vmatpush.msra.mxu0 0.0
    %92 = vmatpush.msra.mxu0 0.0
    %93 = vmatpush.msra.mxu0 0.0
    %94 = vmatpush.msra.mxu0 0.0
    %95 = vmatpush.msra.mxu0 0.0
    %96 = vmatpush.msra.mxu0 0.0
    %97 = vmatpush.msra.mxu0 0.0
    %98 = vmatpush.msra.mxu0 0.0
    %99 = vmatpush.msra.mxu0 %v83
    %100 = vmatpush.msra.mxu0 %v68
    %101 = vmatmul.f32.gmra.mxu0 %v76
    %v102 = vpop.f32.mrf.mxu0
    %v103 = vadd.f32 %v72, %v102
    %104 = vmatmul.f32.gmra.mxu0 %v79
    %v105 = vpop.f32.mrf.mxu0
    %v106 = vadd.f32 %v72, %v105
    %107 = vdwg.mxu0
    %v108 = vmax.f32 %v103, 0.0
    %v109 = vmax.f32 %v106, 0.0
    %v110 = vld [vmem:[%s5] sm:$0xff]
    %v111 = vld [vmem:[%s5 + $0x8] sm:$0xff]
    %v112 = vld [vmem:[%s5 + $0x10] sm:$0xff]
    %v113 = vld [vmem:[%s5 + $0x18] sm:$0xff]
    %v114 = vld [vmem:[%s5 + $0x20] sm:$0xff]
    %v115 = vld [vmem:[%s5 + $0x28] sm:$0xff]
    %v116 = vld [vmem:[%s5 + $0x30] sm:$0xff]
    %v117 = vld [vmem:[%s5 + $0x38] sm:$0xff]
    %v118 = vld [vmem:[%s5 + $0x40] sm:$0xff]
    %v119 = vld [vmem:[%s5 + $0x48] sm:$0xff]
    %v120 = vld [vmem:[%s5 + $0x50] sm:$0xff]
    %v121 = vld [vmem:[%s5 + $0x58] sm:$0xff]
    %v122 = vld [vmem:[%s5 + $0x60] sm:$0xff]
    %v123 = vld [vmem:[%s5 + $0x68] sm:$0xff]
    %v124 = vld [vmem:[%s5 + $0x70] sm:$0xff]
    %v125 = vld [vmem:[%s5 + $0x78] sm:$0xff]
    %v126 = vld [vmem:[%s7] sm:$0x1]
    %v128 = vperm.slane %v126, 0
    %130 = vmatpush.msra.mxu0 %v125
    %131 = vmatpush.msra.mxu0 %v124
    %132 = vmatpush.msra.mxu0 %v123
    %133 = vmatpush.msra.mxu0 %v122
    %134 = vmatpush.msra.mxu0 %v121
    %135 = vmatpush.msra.mxu0 %v120
    %136 = vmatpush.msra.mxu0 %v119
    %137 = vmatpush.msra.mxu0 %v118
    %138 = vmatpush.msra.mxu0 %v117
    %139 = vmatpush.msra.mxu0 %v116
    %140 = vmatpush.msra.mxu0 %v115
    %141 = vmatpush.msra.mxu0 %v114
    %142 = vmatpush.msra.mxu0 %v113
    %143 = vmatpush.msra.mxu0 %v112
    %144 = vmatpush.msra.mxu0 %v111
    %145 = vmatpush.msra.mxu0 %v110
    %146 = vmatmul.f32.gmra.mxu0 %v108
    %v147 = vpop.f32.mrf.mxu0
    %v148 = vadd.f32 %v128, %v147
    %149 = vmatmul.f32.gmra.mxu0 %v109
    %v150 = vpop.f32.mrf.mxu0
    %v151 = vadd.f32 %v128, %v150
    %152 = vdwg.mxu0
    %v153 = vld [vmem:[%s6] sm:$0xff]
    %v154 = vld [vmem:[%s6 + $0x8] sm:$0xff]
    %vm155 = vcmask 130048
    %v157 = vsel %vm155, 0.0, 0
    %159 = vmatpush.msra.mxu0 0.0
    %160 = vmatpush.msra.mxu0 0.0
    %161 = vmatpush.msra.mxu0 0.0
    %162 = vmatpush.msra.mxu0 0.0
    %163 = vmatpush.msra.mxu0 0.0
    %164 = vmatpush.msra.mxu0 0.0
    %165 = vmatpush.msra.mxu0 0.0
    %166 = vmatpush.msra.mxu0 0.0
    %167 = vmatpush.msra.mxu0 0.0
    %168 = vmatpush.msra.mxu0 0.0
    %169 = vmatpush.msra.mxu0 0.0
    %170 = vmatpush.msra.mxu0 0.0
    %171 = vmatpush.msra.mxu0 0.0
    %172 = vmatpush.msra.mxu0 0.0
    %173 = vmatpush.msra.mxu0 %v154
    %174 = vmatpush.msra.mxu0 %v153
    %175 = vmatmul.f32.gmra.mxu0 %v157
    %v176 = vpop.f32.mrf.mxu0
    %v177 = vadd.f32 0.0, %v176
    %178 = vdwg.mxu0
    %v179 = vadd.f32 %v148, %v177
    %v180 = vxor.u32 %v179, 2147483648
    %v181 = vmul.f32 %v180, 1.442695
    %v182 = vpow.pop %v181
    %v183 = vadd.f32 %v182, 1.0
    %v184 = vrcp.pop %v183
    %v185 = vmul.f32 %v183, %v184
    %v186 = vsub.f32 1.0, %v185
    %v187 = vmul.f32 %v184, %v186
    %v188 = vadd.f32 %v184, %v187
    %vm189 = vweird.f32 %v183
    %vm190 = vweird.f32 %v184
    %vm191 = vmor %vm189, %vm190
    %v192 = vsel %vm191, %v184, %v188
    %v193 = vand.u32 2147483647, %v183
    %vm194 = vcmp.eq.f32.partialorder %v193, 8.507059e+37
    %v195 = vand.u32 %v183, 2147483648
    %v196 = vor.u32 1.1754944e-38, %v195
    %v197 = vsel %vm194, %v196, %v192
    %v198 = vmul.f32 1.0, %v197
    %v199 = vtanh.pop %v179
    %v200 = vmul.f32 %v198, 0.0
    %202 = vrot.lane.b32.xlu0 %v199, 96
    %v203 = vpop.permute.xlu0 %202
    %v205 = vmul.f32 %v198, %v203
    %207 = vrot.lane.b32.xlu0 %v205, 16
    %v208 = vpop.permute.xlu0 %207
    %v210 = vadd.f32 %v200, %v208
    %v211 = vtanh.pop %v210
    %213 = vrot.lane.b32.xlu0 %v211, 32
    %v214 = vpop.permute.xlu0 %213
    %v216 = vmul.f32 %v198, %v214
    %218 = vrot.lane.b32.xlu0 %v216, 80
    %v219 = vpop.permute.xlu0 %218
    %v220 = vsel %vm155, %v219, 0
    %222 = vmatpush.msra.mxu0 0.0
    %223 = vmatpush.msra.mxu0 0.0
    %224 = vmatpush.msra.mxu0 0.0
    %225 = vmatpush.msra.mxu0 0.0
    %226 = vmatpush.msra.mxu0 0.0
    %227 = vmatpush.msra.mxu0 0.0
    %228 = vmatpush.msra.mxu0 0.0
    %229 = vmatpush.msra.mxu0 0.0
    %230 = vmatpush.msra.mxu0 0.0
    %231 = vmatpush.msra.mxu0 0.0
    %232 = vmatpush.msra.mxu0 0.0
    %233 = vmatpush.msra.mxu0 0.0
    %234 = vmatpush.msra.mxu0 0.0
    %235 = vmatpush.msra.mxu0 0.0
    %236 = vmatpush.msra.mxu0 %v154
    %237 = vmatpush.msra.mxu0 %v153
    %238 = vmatmul.f32.gmra.mxu0 %v220
    %v239 = vpop.f32.mrf.mxu0
    %v240 = vadd.f32 0.0, %v239
    %241 = vdwg.mxu0
    %v243 = vrot.slane %v240, 6
    %v245 = vadd.f32 %v148, %v243
    %v246 = vxor.u32 %v245, 2147483648
    %v247 = vmul.f32 %v246, 1.442695
    %v248 = vpow.pop %v247
    %v249 = vadd.f32 %v248, 1.0
    %v250 = vrcp.pop %v249
    %v251 = vmul.f32 %v249, %v250
    %v252 = vsub.f32 1.0, %v251
    %v253 = vmul.f32 %v250, %v252
    %v254 = vadd.f32 %v250, %v253
    %vm255 = vweird.f32 %v249
    %vm256 = vweird.f32 %v250
    %vm257 = vmor %vm255, %vm256
    %v258 = vsel %vm257, %v250, %v254
    %v259 = vand.u32 2147483647, %v249
    %vm260 = vcmp.eq.f32.partialorder %v259, 8.507059e+37
    %v261 = vand.u32 %v249, 2147483648
    %v262 = vor.u32 1.1754944e-38, %v261
    %v263 = vsel %vm260, %v262, %v258
    %v264 = vmul.f32 1.0, %v263
    %v265 = vtanh.pop %v245
    %v267 = vrot.slane %v210, 6
    %v269 = vmul.f32 %v264, %v267
    %271 = vrot.lane.b32.xlu0 %v265, 96
    %v272 = vpop.permute.xlu0 %271
    %v274 = vmul.f32 %v264, %v272
    %276 = vrot.lane.b32.xlu0 %v274, 16
    %v277 = vpop.permute.xlu0 %276
    %v279 = vadd.f32 %v269, %v277
    %v280 = vtanh.pop %v279
    %282 = vrot.lane.b32.xlu0 %v280, 32
    %v283 = vpop.permute.xlu0 %282
    %v285 = vmul.f32 %v264, %v283
    %v287 = vrot.slane %v285, 2
    %288 = vrot.lane.b32.xlu0 %v287, 80
    %v289 = vpop.permute.xlu0 %288
    %v290 = vsel %vm155, %v289, 0
    %292 = vmatpush.msra.mxu0 0.0
    %293 = vmatpush.msra.mxu0 0.0
    %294 = vmatpush.msra.mxu0 0.0
    %295 = vmatpush.msra.mxu0 0.0
    %296 = vmatpush.msra.mxu0 0.0
    %297 = vmatpush.msra.mxu0 0.0
    %298 = vmatpush.msra.mxu0 0.0
    %299 = vmatpush.msra.mxu0 0.0
    %300 = vmatpush.msra.mxu0 0.0
    %301 = vmatpush.msra.mxu0 0.0
    %302 = vmatpush.msra.mxu0 0.0
    %303 = vmatpush.msra.mxu0 0.0
    %304 = vmatpush.msra.mxu0 0.0
    %305 = vmatpush.msra.mxu0 0.0
    %306 = vmatpush.msra.mxu0 %v154
    %307 = vmatpush.msra.mxu0 %v153
    %308 = vmatmul.f32.gmra.mxu0 %v290
    %v309 = vpop.f32.mrf.mxu0
    %v310 = vadd.f32 0.0, %v309
    %311 = vdwg.mxu0
    %v313 = vrot.slane %v310, 4
    %v315 = vadd.f32 %v148, %v313
    %v316 = vxor.u32 %v315, 2147483648
    %v317 = vmul.f32 %v316, 1.442695
    %v318 = vpow.pop %v317
    %v319 = vadd.f32 %v318, 1.0
    %v320 = vrcp.pop %v319
    %v321 = vmul.f32 %v319, %v320
    %v322 = vsub.f32 1.0, %v321
    %v323 = vmul.f32 %v320, %v322
    %v324 = vadd.f32 %v320, %v323
    %vm325 = vweird.f32 %v319
    %vm326 = vweird.f32 %v320
    %vm327 = vmor %vm325, %vm326
    %v328 = vsel %vm327, %v320, %v324
    %v329 = vand.u32 2147483647, %v319
    %vm330 = vcmp.eq.f32.partialorder %v329, 8.507059e+37
    %v331 = vand.u32 %v319, 2147483648
    %v332 = vor.u32 1.1754944e-38, %v331
    %v333 = vsel %vm330, %v332, %v328
    %v334 = vmul.f32 1.0, %v333
    %v335 = vtanh.pop %v315
    %v337 = vrot.slane %v279, 6
    %v339 = vmul.f32 %v334, %v337
    %341 = vrot.lane.b32.xlu0 %v335, 96
    %v342 = vpop.permute.xlu0 %341
    %v344 = vmul.f32 %v334, %v342
    %346 = vrot.lane.b32.xlu0 %v344, 16
    %v347 = vpop.permute.xlu0 %346
    %v349 = vadd.f32 %v339, %v347
    %v350 = vtanh.pop %v349
    %352 = vrot.lane.b32.xlu0 %v350, 32
    %v353 = vpop.permute.xlu0 %352
    %v355 = vmul.f32 %v334, %v353
    %v357 = vrot.slane %v355, 4
    %358 = vrot.lane.b32.xlu0 %v357, 80
    %v359 = vpop.permute.xlu0 %358
    %v360 = vsel %vm155, %v359, 0
    %362 = vmatpush.msra.mxu0 0.0
    %363 = vmatpush.msra.mxu0 0.0
    %364 = vmatpush.msra.mxu0 0.0
    %365 = vmatpush.msra.mxu0 0.0
    %366 = vmatpush.msra.mxu0 0.0
    %367 = vmatpush.msra.mxu0 0.0
    %368 = vmatpush.msra.mxu0 0.0
    %369 = vmatpush.msra.mxu0 0.0
    %370 = vmatpush.msra.mxu0 0.0
    %371 = vmatpush.msra.mxu0 0.0
    %372 = vmatpush.msra.mxu0 0.0
    %373 = vmatpush.msra.mxu0 0.0
    %374 = vmatpush.msra.mxu0 0.0
    %375 = vmatpush.msra.mxu0 0.0
    %376 = vmatpush.msra.mxu0 %v154
    %377 = vmatpush.msra.mxu0 %v153
    %378 = vmatmul.f32.gmra.mxu0 %v360
    %v379 = vpop.f32.mrf.mxu0
    %v380 = vadd.f32 0.0, %v379
    %381 = vdwg.mxu0
    %v383 = vrot.slane %v380, 2
    %v385 = vadd.f32 %v148, %v383
    %v386 = vxor.u32 %v385, 2147483648
    %v387 = vmul.f32 %v386, 1.442695
    %v388 = vpow.pop %v387
    %v389 = vadd.f32 %v388, 1.0
    %v390 = vrcp.pop %v389
    %v391 = vmul.f32 %v389, %v390
    %v392 = vsub.f32 1.0, %v391
    %v393 = vmul.f32 %v390, %v392
    %v394 = vadd.f32 %v390, %v393
    %vm395 = vweird.f32 %v389
    %vm396 = vweird.f32 %v390
    %vm397 = vmor %vm395, %vm396
    %v398 = vsel %vm397, %v390, %v394
    %v399 = vand.u32 2147483647, %v389
    %vm400 = vcmp.eq.f32.partialorder %v399, 8.507059e+37
    %v401 = vand.u32 %v389, 2147483648
    %v402 = vor.u32 1.1754944e-38, %v401
    %v403 = vsel %vm400, %v402, %v398
    %v404 = vmul.f32 1.0, %v403
    %v405 = vtanh.pop %v385
    %v407 = vrot.slane %v349, 6
    %v409 = vmul.f32 %v404, %v407
    %411 = vrot.lane.b32.xlu0 %v405, 96
    %v412 = vpop.permute.xlu0 %411
    %v414 = vmul.f32 %v404, %v412
    %416 = vrot.lane.b32.xlu0 %v414, 16
    %v417 = vpop.permute.xlu0 %416
    %v419 = vadd.f32 %v409, %v417
    %v420 = vtanh.pop %v419
    %422 = vrot.lane.b32.xlu0 %v420, 32
    %v423 = vpop.permute.xlu0 %422
    %v425 = vmul.f32 %v404, %v423
    %v427 = vrot.slane %v425, 6
    %428 = vrot.lane.b32.xlu0 %v427, 80
    %v429 = vpop.permute.xlu0 %428
    %v430 = vsel %vm155, %v429, 0
    %432 = vmatpush.msra.mxu0 0.0
    %433 = vmatpush.msra.mxu0 0.0
    %434 = vmatpush.msra.mxu0 0.0
    %435 = vmatpush.msra.mxu0 0.0
    %436 = vmatpush.msra.mxu0 0.0
    %437 = vmatpush.msra.mxu0 0.0
    %438 = vmatpush.msra.mxu0 0.0
    %439 = vmatpush.msra.mxu0 0.0
    %440 = vmatpush.msra.mxu0 0.0
    %441 = vmatpush.msra.mxu0 0.0
    %442 = vmatpush.msra.mxu0 0.0
    %443 = vmatpush.msra.mxu0 0.0
    %444 = vmatpush.msra.mxu0 0.0
    %445 = vmatpush.msra.mxu0 0.0
    %446 = vmatpush.msra.mxu0 %v154
    %447 = vmatpush.msra.mxu0 %v153
    %448 = vmatmul.f32.gmra.mxu0 %v430
    %v449 = vpop.f32.mrf.mxu0
    %v450 = vadd.f32 0.0, %v449
    %451 = vdwg.mxu0
    %v452 = vadd.f32 %v151, %v450
    %v453 = vxor.u32 %v452, 2147483648
    %v454 = vmul.f32 %v453, 1.442695
    %v455 = vpow.pop %v454
    %v456 = vadd.f32 %v455, 1.0
    %v457 = vrcp.pop %v456
    %v458 = vmul.f32 %v456, %v457
    %v459 = vsub.f32 1.0, %v458
    %v460 = vmul.f32 %v457, %v459
    %v461 = vadd.f32 %v457, %v460
    %vm462 = vweird.f32 %v456
    %vm463 = vweird.f32 %v457
    %vm464 = vmor %vm462, %vm463
    %v465 = vsel %vm464, %v457, %v461
    %v466 = vand.u32 2147483647, %v456
    %vm467 = vcmp.eq.f32.partialorder %v466, 8.507059e+37
    %v468 = vand.u32 %v456, 2147483648
    %v469 = vor.u32 1.1754944e-38, %v468
    %v470 = vsel %vm467, %v469, %v465
    %v471 = vmul.f32 1.0, %v470
    %v472 = vtanh.pop %v452
    %v474 = vrot.slane %v419, 6
    %v476 = vmul.f32 %v471, %v474
    %478 = vrot.lane.b32.xlu0 %v472, 96
    %v479 = vpop.permute.xlu0 %478
    %v481 = vmul.f32 %v471, %v479
    %483 = vrot.lane.b32.xlu0 %v481, 16
    %v484 = vpop.permute.xlu0 %483
    %v486 = vadd.f32 %v476, %v484
    %v487 = vtanh.pop %v486
    %489 = vrot.lane.b32.xlu0 %v487, 32
    %v490 = vpop.permute.xlu0 %489
    %v492 = vmul.f32 %v471, %v490
    %494 = vrot.lane.b32.xlu0 %v492, 80
    %v495 = vpop.permute.xlu0 %494
    %v496 = vsel %vm155, %v495, 0
    %498 = vmatpush.msra.mxu0 0.0
    %499 = vmatpush.msra.mxu0 0.0
    %500 = vmatpush.msra.mxu0 0.0
    %501 = vmatpush.msra.mxu0 0.0
    %502 = vmatpush.msra.mxu0 0.0
    %503 = vmatpush.msra.mxu0 0.0
    %504 = vmatpush.msra.mxu0 0.0
    %505 = vmatpush.msra.mxu0 0.0
    %506 = vmatpush.msra.mxu0 0.0
    %507 = vmatpush.msra.mxu0 0.0
    %508 = vmatpush.msra.mxu0 0.0
    %509 = vmatpush.msra.mxu0 0.0
    %510 = vmatpush.msra.mxu0 0.0
    %511 = vmatpush.msra.mxu0 0.0
    %512 = vmatpush.msra.mxu0 %v154
    %513 = vmatpush.msra.mxu0 %v153
    %514 = vmatmul.f32.gmra.mxu0 %v496
    %v515 = vpop.f32.mrf.mxu0
    %v516 = vadd.f32 0.0, %v515
    %517 = vdwg.mxu0
    %v519 = vrot.slane %v516, 6
    %v521 = vadd.f32 %v151, %v519
    %v522 = vxor.u32 %v521, 2147483648
    %v523 = vmul.f32 %v522, 1.442695
    %v524 = vpow.pop %v523
    %v525 = vadd.f32 %v524, 1.0
    %v526 = vrcp.pop %v525
    %v527 = vmul.f32 %v525, %v526
    %v528 = vsub.f32 1.0, %v527
    %v529 = vmul.f32 %v526, %v528
    %v530 = vadd.f32 %v526, %v529
    %vm531 = vweird.f32 %v525
    %vm532 = vweird.f32 %v526
    %vm533 = vmor %vm531, %vm532
    %v534 = vsel %vm533, %v526, %v530
    %v535 = vand.u32 2147483647, %v525
    %vm536 = vcmp.eq.f32.partialorder %v535, 8.507059e+37
    %v537 = vand.u32 %v525, 2147483648
    %v538 = vor.u32 1.1754944e-38, %v537
    %v539 = vsel %vm536, %v538, %v534
    %v540 = vmul.f32 1.0, %v539
    %v541 = vtanh.pop %v521
    %v543 = vrot.slane %v486, 6
    %v545 = vmul.f32 %v540, %v543
    %547 = vrot.lane.b32.xlu0 %v541, 96
    %v548 = vpop.permute.xlu0 %547
    %v550 = vmul.f32 %v540, %v548
    %552 = vrot.lane.b32.xlu0 %v550, 16
    %v553 = vpop.permute.xlu0 %552
    %v555 = vadd.f32 %v545, %v553
    %v556 = vtanh.pop %v555
    %558 = vrot.lane.b32.xlu0 %v556, 32
    %v559 = vpop.permute.xlu0 %558
    %v561 = vmul.f32 %v540, %v559
    %v563 = vrot.slane %v561, 2
    %564 = vrot.lane.b32.xlu0 %v563, 80
    %v565 = vpop.permute.xlu0 %564
    %v566 = vsel %vm155, %v565, 0
    %568 = vmatpush.msra.mxu0 0.0
    %569 = vmatpush.msra.mxu0 0.0
    %570 = vmatpush.msra.mxu0 0.0
    %571 = vmatpush.msra.mxu0 0.0
    %572 = vmatpush.msra.mxu0 0.0
    %573 = vmatpush.msra.mxu0 0.0
    %574 = vmatpush.msra.mxu0 0.0
    %575 = vmatpush.msra.mxu0 0.0
    %576 = vmatpush.msra.mxu0 0.0
    %577 = vmatpush.msra.mxu0 0.0
    %578 = vmatpush.msra.mxu0 0.0
    %579 = vmatpush.msra.mxu0 0.0
    %580 = vmatpush.msra.mxu0 0.0
    %581 = vmatpush.msra.mxu0 0.0
    %582 = vmatpush.msra.mxu0 %v154
    %583 = vmatpush.msra.mxu0 %v153
    %584 = vmatmul.f32.gmra.mxu0 %v566
    %v585 = vpop.f32.mrf.mxu0
    %v586 = vadd.f32 0.0, %v585
    %587 = vdwg.mxu0
    %v589 = vrot.slane %v586, 4
    %v591 = vadd.f32 %v151, %v589
    %v592 = vxor.u32 %v591, 2147483648
    %v593 = vmul.f32 %v592, 1.442695
    %v594 = vpow.pop %v593
    %v595 = vadd.f32 %v594, 1.0
    %v596 = vrcp.pop %v595
    %v597 = vmul.f32 %v595, %v596
    %v598 = vsub.f32 1.0, %v597
    %v599 = vmul.f32 %v596, %v598
    %v600 = vadd.f32 %v596, %v599
    %vm601 = vweird.f32 %v595
    %vm602 = vweird.f32 %v596
    %vm603 = vmor %vm601, %vm602
    %v604 = vsel %vm603, %v596, %v600
    %v605 = vand.u32 2147483647, %v595
    %vm606 = vcmp.eq.f32.partialorder %v605, 8.507059e+37
    %v607 = vand.u32 %v595, 2147483648
    %v608 = vor.u32 1.1754944e-38, %v607
    %v609 = vsel %vm606, %v608, %v604
    %v610 = vmul.f32 1.0, %v609
    %v611 = vtanh.pop %v591
    %v613 = vrot.slane %v555, 6
    %v615 = vmul.f32 %v610, %v613
    %617 = vrot.lane.b32.xlu0 %v611, 96
    %v618 = vpop.permute.xlu0 %617
    %v620 = vmul.f32 %v610, %v618
    %622 = vrot.lane.b32.xlu0 %v620, 16
    %v623 = vpop.permute.xlu0 %622
    %v625 = vadd.f32 %v615, %v623
    %v626 = vtanh.pop %v625
    %628 = vrot.lane.b32.xlu0 %v626, 32
    %v629 = vpop.permute.xlu0 %628
    %v631 = vmul.f32 %v610, %v629
    %v633 = vrot.slane %v631, 4
    %634 = vrot.lane.b32.xlu0 %v633, 80
    %v635 = vpop.permute.xlu0 %634
    %v636 = vsel %vm155, %v635, 0
    %638 = vmatpush.msra.mxu0 0.0
    %639 = vmatpush.msra.mxu0 0.0
    %640 = vmatpush.msra.mxu0 0.0
    %641 = vmatpush.msra.mxu0 0.0
    %642 = vmatpush.msra.mxu0 0.0
    %643 = vmatpush.msra.mxu0 0.0
    %644 = vmatpush.msra.mxu0 0.0
    %645 = vmatpush.msra.mxu0 0.0
    %646 = vmatpush.msra.mxu0 0.0
    %647 = vmatpush.msra.mxu0 0.0
    %648 = vmatpush.msra.mxu0 0.0
    %649 = vmatpush.msra.mxu0 0.0
    %650 = vmatpush.msra.mxu0 0.0
    %651 = vmatpush.msra.mxu0 0.0
    %652 = vmatpush.msra.mxu0 %v154
    %653 = vmatpush.msra.mxu0 %v153
    %654 = vmatmul.f32.gmra.mxu0 %v636
    %v655 = vpop.f32.mrf.mxu0
    %v656 = vadd.f32 0.0, %v655
    %657 = vdwg.mxu0
    %v659 = vrot.slane %v656, 2
    %v661 = vadd.f32 %v151, %v659
    %v662 = vxor.u32 %v661, 2147483648
    %v663 = vmul.f32 %v662, 1.442695
    %v664 = vpow.pop %v663
    %v665 = vadd.f32 %v664, 1.0
    %v666 = vrcp.pop %v665
    %v667 = vmul.f32 %v665, %v666
    %v668 = vsub.f32 1.0, %v667
    %v669 = vmul.f32 %v666, %v668
    %v670 = vadd.f32 %v666, %v669
    %vm671 = vweird.f32 %v665
    %vm672 = vweird.f32 %v666
    %vm673 = vmor %vm671, %vm672
    %v674 = vsel %vm673, %v666, %v670
    %v675 = vand.u32 2147483647, %v665
    %vm676 = vcmp.eq.f32.partialorder %v675, 8.507059e+37
    %v677 = vand.u32 %v665, 2147483648
    %v678 = vor.u32 1.1754944e-38, %v677
    %v679 = vsel %vm676, %v678, %v674
    %v680 = vmul.f32 1.0, %v679
    %v681 = vtanh.pop %v661
    %v683 = vrot.slane %v625, 6
    %v685 = vmul.f32 %v680, %v683
    %687 = vrot.lane.b32.xlu0 %v681, 96
    %v688 = vpop.permute.xlu0 %687
    %v690 = vmul.f32 %v680, %v688
    %692 = vrot.lane.b32.xlu0 %v690, 16
    %v693 = vpop.permute.xlu0 %692
    %v695 = vadd.f32 %v685, %v693
    %v696 = vtanh.pop %v695
    %698 = vrot.lane.b32.xlu0 %v696, 32
    %v699 = vpop.permute.xlu0 %698
    %v701 = vmul.f32 %v680, %v699
    %v702 = vld [vmem:[%s9] sm:$0xff]
    %v703 = vld [vmem:[%s9 + $0x8] sm:$0xff]
    %v705 = vrot.slane %v701, 6
    %706 = vrot.lane.b32.xlu0 %v705, 80
    %v707 = vpop.permute.xlu0 %706
    %v708 = vsel %vm155, %v707, 0
    %710 = vmatpush.msra.mxu0 0.0
    %711 = vmatpush.msra.mxu0 0.0
    %712 = vmatpush.msra.mxu0 0.0
    %713 = vmatpush.msra.mxu0 0.0
    %714 = vmatpush.msra.mxu0 0.0
    %715 = vmatpush.msra.mxu0 0.0
    %716 = vmatpush.msra.mxu0 0.0
    %717 = vmatpush.msra.mxu0 0.0
    %718 = vmatpush.msra.mxu0 0.0
    %719 = vmatpush.msra.mxu0 0.0
    %720 = vmatpush.msra.mxu0 0.0
    %721 = vmatpush.msra.mxu0 0.0
    %722 = vmatpush.msra.mxu0 0.0
    %723 = vmatpush.msra.mxu0 0.0
    %724 = vmatpush.msra.mxu0 %v703
    %725 = vmatpush.msra.mxu0 %v702
    %726 = vmatmul.f32.gmra.mxu0 %v708
    %v727 = vpop.f32.mrf.mxu0
    %v728 = vadd.f32 0.0, %v727
    %729 = vdwg.mxu0
    %v730 = vld [vmem:[%s1] sm:$0xff]
    %v731 = vld [vmem:[%s1 + $0x8] sm:$0xf]
    %v732 = vld [vmem:[%s8] sm:$0xff]
    %v733 = vld [vmem:[%s8 + $0x8] sm:$0x1]
    %v734 = vlaneseq
    %v735 = vshrl.u32 %v734, 7
    %v736 = vadd.s32 %v735, 8
    %v737 = vlaneseq
    %v738 = vand.u32 %v737, 127
    %vm739 = vcmp.lt.s32.totalorder %v735, 0
    %v740 = vsub.s32 0, %v735
    %v741 = vsel %vm739, %v740, %v735
    %v742 = vshrl.u32 %v741, 1
    %v743 = vand.u32 %v741, 1
    %v744 = vsub.s32 0, %v743
    %v745 = vsel %vm739, %v744, %v743
    %vm746 = vcmp.lt.s32.totalorder %v736, 0
    %v747 = vsub.s32 0, %v736
    %v748 = vsel %vm746, %v747, %v736
    %v749 = vshrl.u32 %v748, 1
    %v750 = vand.u32 %v748, 1
    %v751 = vsub.s32 0, %v750
    %v752 = vsel %vm746, %v751, %v750
    %vm753 = vcmp.ne.s32.totalorder %v745, 0
    %vm754 = vcmp.ne.s32.totalorder %v752, 0
    %vm755 = vcmp.lt.s32.totalorder %v745, 0
    %vm756 = vcmp.lt.s32.totalorder %v752, 0
    %vm757 = vmand %vm755, %vm753
    %vm758 = vmand %vm756, %vm754
    %v759 = vadd.s32 %v745, 2
    %v760 = vadd.s32 %v752, 2
    %v761 = vsel %vm757, %v759, %v745
    %v762 = vsel %vm758, %v760, %v752
    %vm763 = vcmp.eq.s32.totalorder %v761, %v738
    %vm764 = vcmp.eq.s32.totalorder %v762, %v738
    %v765 = vsel %vm763, 1.0, 0.0
    %v766 = vsel %vm764, 1.0, 0.0
    %vm767 = vcmask 15360
    %v769 = vsel %vm767, %v765, 0
    %v772 = vsel %vm767, %v766, 0
    %vm774 = vcmask 1041408
    %v776 = vsel %vm774, %v728, 0
    %778 = vmatpush.msra.mxu0 0.0
    %779 = vmatpush.msra.mxu0 0.0
    %780 = vmatpush.msra.mxu0 0.0
    %781 = vmatpush.msra.mxu0 0.0
    %782 = vmatpush.msra.mxu0 0.0
    %783 = vmatpush.msra.mxu0 0.0
    %784 = vmatpush.msra.mxu0 0.0
    %785 = vmatpush.msra.mxu0 0.0
    %786 = vmatpush.msra.mxu0 0.0
    %787 = vmatpush.msra.mxu0 0.0
    %788 = vmatpush.msra.mxu0 0.0
    %789 = vmatpush.msra.mxu0 0.0
    %790 = vmatpush.msra.mxu0 0.0
    %791 = vmatpush.msra.mxu0 0.0
    %792 = vmatpush.msra.mxu0 0.0
    %793 = vmatpush.msra.mxu0 %v776
    %794 = vmatmul.f32.gmra.mxu0 %v769
    %v795 = vpop.f32.mrf.mxu0
    %v796 = vadd.f32 0.0, %v795
    %797 = vmatmul.f32.gmra.mxu0 %v772
    %v798 = vpop.f32.mrf.mxu0
    %v799 = vadd.f32 0.0, %v798
    %800 = vdwg.mxu0
    %v802 = vsel %vm74, %v730, 0
    %v805 = vsel %vm74, %v731, 0
    %v808 = vsel %vm81, %v733, 0
    %810 = vmatpush.msra.mxu0 0.0
    %811 = vmatpush.msra.mxu0 0.0
    %812 = vmatpush.msra.mxu0 0.0
    %813 = vmatpush.msra.mxu0 0.0
    %814 = vmatpush.msra.mxu0 0.0
    %815 = vmatpush.msra.mxu0 0.0
    %816 = vmatpush.msra.mxu0 0.0
    %817 = vmatpush.msra.mxu0 0.0
    %818 = vmatpush.msra.mxu0 0.0
    %819 = vmatpush.msra.mxu0 0.0
    %820 = vmatpush.msra.mxu0 0.0
    %821 = vmatpush.msra.mxu0 0.0
    %822 = vmatpush.msra.mxu0 0.0
    %823 = vmatpush.msra.mxu0 0.0
    %824 = vmatpush.msra.mxu0 %v808
    %825 = vmatpush.msra.mxu0 %v732
    %826 = vmatmul.f32.gmra.mxu0 %v802
    %v827 = vpop.f32.mrf.mxu0
    %v828 = vadd.f32 %v796, %v827
    %829 = vmatmul.f32.gmra.mxu0 %v805
    %v830 = vpop.f32.mrf.mxu0
    %v831 = vadd.f32 %v799, %v830
    %832 = vdwg.mxu0
    %v833 = vld [vmem:[%s10] sm:$0x1]
    %v835 = vperm.slane %v833, 0
    %v837 = vadd.f32 %v828, %v835
    %v838 = vadd.f32 %v831, %v835
    %v839 = vmax.f32 %v837, 0.0
    %v840 = vmax.f32 %v838, 0.0
    %v841 = vld [vmem:[%s11] sm:$0xff]
    %v842 = vld [vmem:[%s11 + $0x8] sm:$0xff]
    %v843 = vld [vmem:[%s11 + $0x10] sm:$0xff]
    %v844 = vld [vmem:[%s11 + $0x18] sm:$0xff]
    %v845 = vld [vmem:[%s11 + $0x20] sm:$0xff]
    %v846 = vld [vmem:[%s11 + $0x28] sm:$0xff]
    %v847 = vld [vmem:[%s11 + $0x30] sm:$0xff]
    %v848 = vld [vmem:[%s11 + $0x38] sm:$0xff]
    %v849 = vld [vmem:[%s11 + $0x40] sm:$0xff]
    %v850 = vld [vmem:[%s11 + $0x48] sm:$0xff]
    %v851 = vld [vmem:[%s11 + $0x50] sm:$0xff]
    %v852 = vld [vmem:[%s11 + $0x58] sm:$0xff]
    %v853 = vld [vmem:[%s11 + $0x60] sm:$0xff]
    %v854 = vld [vmem:[%s11 + $0x68] sm:$0xff]
    %v855 = vld [vmem:[%s11 + $0x70] sm:$0xff]
    %v856 = vld [vmem:[%s11 + $0x78] sm:$0xff]
    %v857 = vld [vmem:[%s13] sm:$0x1]
    %v859 = vperm.slane %v857, 0
    %861 = vmatpush.msra.mxu0 %v856
    %862 = vmatpush.msra.mxu0 %v855
    %863 = vmatpush.msra.mxu0 %v854
    %864 = vmatpush.msra.mxu0 %v853
    %865 = vmatpush.msra.mxu0 %v852
    %866 = vmatpush.msra.mxu0 %v851
    %867 = vmatpush.msra.mxu0 %v850
    %868 = vmatpush.msra.mxu0 %v849
    %869 = vmatpush.msra.mxu0 %v848
    %870 = vmatpush.msra.mxu0 %v847
    %871 = vmatpush.msra.mxu0 %v846
    %872 = vmatpush.msra.mxu0 %v845
    %873 = vmatpush.msra.mxu0 %v844
    %874 = vmatpush.msra.mxu0 %v843
    %875 = vmatpush.msra.mxu0 %v842
    %876 = vmatpush.msra.mxu0 %v841
    %877 = vmatmul.f32.gmra.mxu0 %v839
    %v878 = vpop.f32.mrf.mxu0
    %v879 = vadd.f32 %v859, %v878
    %880 = vmatmul.f32.gmra.mxu0 %v840
    %v881 = vpop.f32.mrf.mxu0
    %v882 = vadd.f32 %v859, %v881
    %883 = vdwg.mxu0
    %v884 = vld [vmem:[%s12] sm:$0xff]
    %v885 = vld [vmem:[%s12 + $0x8] sm:$0xff]
    %886 = vmatpush.msra.mxu0 0.0
    %887 = vmatpush.msra.mxu0 0.0
    %888 = vmatpush.msra.mxu0 0.0
    %889 = vmatpush.msra.mxu0 0.0
    %890 = vmatpush.msra.mxu0 0.0
    %891 = vmatpush.msra.mxu0 0.0
    %892 = vmatpush.msra.mxu0 0.0
    %893 = vmatpush.msra.mxu0 0.0
    %894 = vmatpush.msra.mxu0 0.0
    %895 = vmatpush.msra.mxu0 0.0
    %896 = vmatpush.msra.mxu0 0.0
    %897 = vmatpush.msra.mxu0 0.0
    %898 = vmatpush.msra.mxu0 0.0
    %899 = vmatpush.msra.mxu0 0.0
    %900 = vmatpush.msra.mxu0 %v885
    %901 = vmatpush.msra.mxu0 %v884
    %902 = vmatmul.f32.gmra.mxu0 %v157
    %v903 = vpop.f32.mrf.mxu0
    %v904 = vadd.f32 0.0, %v903
    %905 = vdwg.mxu0
    %v906 = vadd.f32 %v879, %v904
    %v907 = vxor.u32 %v906, 2147483648
    %v908 = vmul.f32 %v907, 1.442695
    %v909 = vpow.pop %v908
    %v910 = vadd.f32 %v909, 1.0
    %v911 = vrcp.pop %v910
    %v912 = vmul.f32 %v910, %v911
    %v913 = vsub.f32 1.0, %v912
    %v914 = vmul.f32 %v911, %v913
    %v915 = vadd.f32 %v911, %v914
    %vm916 = vweird.f32 %v910
    %vm917 = vweird.f32 %v911
    %vm918 = vmor %vm916, %vm917
    %v919 = vsel %vm918, %v911, %v915
    %v920 = vand.u32 2147483647, %v910
    %vm921 = vcmp.eq.f32.partialorder %v920, 8.507059e+37
    %v922 = vand.u32 %v910, 2147483648
    %v923 = vor.u32 1.1754944e-38, %v922
    %v924 = vsel %vm921, %v923, %v919
    %v925 = vmul.f32 1.0, %v924
    %v926 = vtanh.pop %v906
    %v927 = vmul.f32 %v925, 0.0
    %929 = vrot.lane.b32.xlu0 %v926, 96
    %v930 = vpop.permute.xlu0 %929
    %v932 = vmul.f32 %v925, %v930
    %934 = vrot.lane.b32.xlu0 %v932, 16
    %v935 = vpop.permute.xlu0 %934
    %v937 = vadd.f32 %v927, %v935
    %v938 = vtanh.pop %v937
    %940 = vrot.lane.b32.xlu0 %v938, 32
    %v941 = vpop.permute.xlu0 %940
    %v943 = vmul.f32 %v925, %v941
    %945 = vrot.lane.b32.xlu0 %v943, 80
    %v946 = vpop.permute.xlu0 %945
    %v947 = vsel %vm155, %v946, 0
    %949 = vmatpush.msra.mxu0 0.0
    %950 = vmatpush.msra.mxu0 0.0
    %951 = vmatpush.msra.mxu0 0.0
    %952 = vmatpush.msra.mxu0 0.0
    %953 = vmatpush.msra.mxu0 0.0
    %954 = vmatpush.msra.mxu0 0.0
    %955 = vmatpush.msra.mxu0 0.0
    %956 = vmatpush.msra.mxu0 0.0
    %957 = vmatpush.msra.mxu0 0.0
    %958 = vmatpush.msra.mxu0 0.0
    %959 = vmatpush.msra.mxu0 0.0
    %960 = vmatpush.msra.mxu0 0.0
    %961 = vmatpush.msra.mxu0 0.0
    %962 = vmatpush.msra.mxu0 0.0
    %963 = vmatpush.msra.mxu0 %v885
    %964 = vmatpush.msra.mxu0 %v884
    %965 = vmatmul.f32.gmra.mxu0 %v947
    %v966 = vpop.f32.mrf.mxu0
    %v967 = vadd.f32 0.0, %v966
    %968 = vdwg.mxu0
    %v970 = vrot.slane %v967, 6
    %v972 = vadd.f32 %v879, %v970
    %v973 = vxor.u32 %v972, 2147483648
    %v974 = vmul.f32 %v973, 1.442695
    %v975 = vpow.pop %v974
    %v976 = vadd.f32 %v975, 1.0
    %v977 = vrcp.pop %v976
    %v978 = vmul.f32 %v976, %v977
    %v979 = vsub.f32 1.0, %v978
    %v980 = vmul.f32 %v977, %v979
    %v981 = vadd.f32 %v977, %v980
    %vm982 = vweird.f32 %v976
    %vm983 = vweird.f32 %v977
    %vm984 = vmor %vm982, %vm983
    %v985 = vsel %vm984, %v977, %v981
    %v986 = vand.u32 2147483647, %v976
    %vm987 = vcmp.eq.f32.partialorder %v986, 8.507059e+37
    %v988 = vand.u32 %v976, 2147483648
    %v989 = vor.u32 1.1754944e-38, %v988
    %v990 = vsel %vm987, %v989, %v985
    %v991 = vmul.f32 1.0, %v990
    %v992 = vtanh.pop %v972
    %v994 = vrot.slane %v937, 6
    %v996 = vmul.f32 %v991, %v994
    %998 = vrot.lane.b32.xlu0 %v992, 96
    %v999 = vpop.permute.xlu0 %998
    %v1001 = vmul.f32 %v991, %v999
    %1003 = vrot.lane.b32.xlu0 %v1001, 16
    %v1004 = vpop.permute.xlu0 %1003
    %v1006 = vadd.f32 %v996, %v1004
    %v1007 = vtanh.pop %v1006
    %1009 = vrot.lane.b32.xlu0 %v1007, 32
    %v1010 = vpop.permute.xlu0 %1009
    %v1012 = vmul.f32 %v991, %v1010
    %v1014 = vrot.slane %v1012, 2
    %1015 = vrot.lane.b32.xlu0 %v1014, 80
    %v1016 = vpop.permute.xlu0 %1015
    %v1017 = vsel %vm155, %v1016, 0
    %1019 = vmatpush.msra.mxu0 0.0
    %1020 = vmatpush.msra.mxu0 0.0
    %1021 = vmatpush.msra.mxu0 0.0
    %1022 = vmatpush.msra.mxu0 0.0
    %1023 = vmatpush.msra.mxu0 0.0
    %1024 = vmatpush.msra.mxu0 0.0
    %1025 = vmatpush.msra.mxu0 0.0
    %1026 = vmatpush.msra.mxu0 0.0
    %1027 = vmatpush.msra.mxu0 0.0
    %1028 = vmatpush.msra.mxu0 0.0
    %1029 = vmatpush.msra.mxu0 0.0
    %1030 = vmatpush.msra.mxu0 0.0
    %1031 = vmatpush.msra.mxu0 0.0
    %1032 = vmatpush.msra.mxu0 0.0
    %1033 = vmatpush.msra.mxu0 %v885
    %1034 = vmatpush.msra.mxu0 %v884
    %1035 = vmatmul.f32.gmra.mxu0 %v1017
    %v1036 = vpop.f32.mrf.mxu0
    %v1037 = vadd.f32 0.0, %v1036
    %1038 = vdwg.mxu0
    %v1040 = vrot.slane %v1037, 4
    %v1042 = vadd.f32 %v879, %v1040
    %v1043 = vxor.u32 %v1042, 2147483648
    %v1044 = vmul.f32 %v1043, 1.442695
    %v1045 = vpow.pop %v1044
    %v1046 = vadd.f32 %v1045, 1.0
    %v1047 = vrcp.pop %v1046
    %v1048 = vmul.f32 %v1046, %v1047
    %v1049 = vsub.f32 1.0, %v1048
    %v1050 = vmul.f32 %v1047, %v1049
    %v1051 = vadd.f32 %v1047, %v1050
    %vm1052 = vweird.f32 %v1046
    %vm1053 = vweird.f32 %v1047
    %vm1054 = vmor %vm1052, %vm1053
    %v1055 = vsel %vm1054, %v1047, %v1051
    %v1056 = vand.u32 2147483647, %v1046
    %vm1057 = vcmp.eq.f32.partialorder %v1056, 8.507059e+37
    %v1058 = vand.u32 %v1046, 2147483648
    %v1059 = vor.u32 1.1754944e-38, %v1058
    %v1060 = vsel %vm1057, %v1059, %v1055
    %v1061 = vmul.f32 1.0, %v1060
    %v1062 = vtanh.pop %v1042
    %v1064 = vrot.slane %v1006, 6
    %v1066 = vmul.f32 %v1061, %v1064
    %1068 = vrot.lane.b32.xlu0 %v1062, 96
    %v1069 = vpop.permute.xlu0 %1068
    %v1071 = vmul.f32 %v1061, %v1069
    %1073 = vrot.lane.b32.xlu0 %v1071, 16
    %v1074 = vpop.permute.xlu0 %1073
    %v1076 = vadd.f32 %v1066, %v1074
    %v1077 = vtanh.pop %v1076
    %1079 = vrot.lane.b32.xlu0 %v1077, 32
    %v1080 = vpop.permute.xlu0 %1079
    %v1082 = vmul.f32 %v1061, %v1080
    %v1084 = vrot.slane %v1082, 4
    %1085 = vrot.lane.b32.xlu0 %v1084, 80
    %v1086 = vpop.permute.xlu0 %1085
    %v1087 = vsel %vm155, %v1086, 0
    %1089 = vmatpush.msra.mxu0 0.0
    %1090 = vmatpush.msra.mxu0 0.0
    %1091 = vmatpush.msra.mxu0 0.0
    %1092 = vmatpush.msra.mxu0 0.0
    %1093 = vmatpush.msra.mxu0 0.0
    %1094 = vmatpush.msra.mxu0 0.0
    %1095 = vmatpush.msra.mxu0 0.0
    %1096 = vmatpush.msra.mxu0 0.0
    %1097 = vmatpush.msra.mxu0 0.0
    %1098 = vmatpush.msra.mxu0 0.0
    %1099 = vmatpush.msra.mxu0 0.0
    %1100 = vmatpush.msra.mxu0 0.0
    %1101 = vmatpush.msra.mxu0 0.0
    %1102 = vmatpush.msra.mxu0 0.0
    %1103 = vmatpush.msra.mxu0 %v885
    %1104 = vmatpush.msra.mxu0 %v884
    %1105 = vmatmul.f32.gmra.mxu0 %v1087
    %v1106 = vpop.f32.mrf.mxu0
    %v1107 = vadd.f32 0.0, %v1106
    %1108 = vdwg.mxu0
    %v1110 = vrot.slane %v1107, 2
    %v1112 = vadd.f32 %v879, %v1110
    %v1113 = vxor.u32 %v1112, 2147483648
    %v1114 = vmul.f32 %v1113, 1.442695
    %v1115 = vpow.pop %v1114
    %v1116 = vadd.f32 %v1115, 1.0
    %v1117 = vrcp.pop %v1116
    %v1118 = vmul.f32 %v1116, %v1117
    %v1119 = vsub.f32 1.0, %v1118
    %v1120 = vmul.f32 %v1117, %v1119
    %v1121 = vadd.f32 %v1117, %v1120
    %vm1122 = vweird.f32 %v1116
    %vm1123 = vweird.f32 %v1117
    %vm1124 = vmor %vm1122, %vm1123
    %v1125 = vsel %vm1124, %v1117, %v1121
    %v1126 = vand.u32 2147483647, %v1116
    %vm1127 = vcmp.eq.f32.partialorder %v1126, 8.507059e+37
    %v1128 = vand.u32 %v1116, 2147483648
    %v1129 = vor.u32 1.1754944e-38, %v1128
    %v1130 = vsel %vm1127, %v1129, %v1125
    %v1131 = vmul.f32 1.0, %v1130
    %v1132 = vtanh.pop %v1112
    %v1134 = vrot.slane %v1076, 6
    %v1136 = vmul.f32 %v1131, %v1134
    %1138 = vrot.lane.b32.xlu0 %v1132, 96
    %v1139 = vpop.permute.xlu0 %1138
    %v1141 = vmul.f32 %v1131, %v1139
    %1143 = vrot.lane.b32.xlu0 %v1141, 16
    %v1144 = vpop.permute.xlu0 %1143
    %v1146 = vadd.f32 %v1136, %v1144
    %v1147 = vtanh.pop %v1146
    %1149 = vrot.lane.b32.xlu0 %v1147, 32
    %v1150 = vpop.permute.xlu0 %1149
    %v1152 = vmul.f32 %v1131, %v1150
    %v1154 = vrot.slane %v1152, 6
    %1155 = vrot.lane.b32.xlu0 %v1154, 80
    %v1156 = vpop.permute.xlu0 %1155
    %v1157 = vsel %vm155, %v1156, 0
    %1159 = vmatpush.msra.mxu0 0.0
    %1160 = vmatpush.msra.mxu0 0.0
    %1161 = vmatpush.msra.mxu0 0.0
    %1162 = vmatpush.msra.mxu0 0.0
    %1163 = vmatpush.msra.mxu0 0.0
    %1164 = vmatpush.msra.mxu0 0.0
    %1165 = vmatpush.msra.mxu0 0.0
    %1166 = vmatpush.msra.mxu0 0.0
    %1167 = vmatpush.msra.mxu0 0.0
    %1168 = vmatpush.msra.mxu0 0.0
    %1169 = vmatpush.msra.mxu0 0.0
    %1170 = vmatpush.msra.mxu0 0.0
    %1171 = vmatpush.msra.mxu0 0.0
    %1172 = vmatpush.msra.mxu0 0.0
    %1173 = vmatpush.msra.mxu0 %v885
    %1174 = vmatpush.msra.mxu0 %v884
    %1175 = vmatmul.f32.gmra.mxu0 %v1157
    %v1176 = vpop.f32.mrf.mxu0
    %v1177 = vadd.f32 0.0, %v1176
    %1178 = vdwg.mxu0
    %v1179 = vadd.f32 %v882, %v1177
    %v1180 = vxor.u32 %v1179, 2147483648
    %v1181 = vmul.f32 %v1180, 1.442695
    %v1182 = vpow.pop %v1181
    %v1183 = vadd.f32 %v1182, 1.0
    %v1184 = vrcp.pop %v1183
    %v1185 = vmul.f32 %v1183, %v1184
    %v1186 = vsub.f32 1.0, %v1185
    %v1187 = vmul.f32 %v1184, %v1186
    %v1188 = vadd.f32 %v1184, %v1187
    %vm1189 = vweird.f32 %v1183
    %vm1190 = vweird.f32 %v1184
    %vm1191 = vmor %vm1189, %vm1190
    %v1192 = vsel %vm1191, %v1184, %v1188
    %v1193 = vand.u32 2147483647, %v1183
    %vm1194 = vcmp.eq.f32.partialorder %v1193, 8.507059e+37
    %v1195 = vand.u32 %v1183, 2147483648
    %v1196 = vor.u32 1.1754944e-38, %v1195
    %v1197 = vsel %vm1194, %v1196, %v1192
    %v1198 = vmul.f32 1.0, %v1197
    %v1199 = vtanh.pop %v1179
    %v1201 = vrot.slane %v1146, 6
    %v1203 = vmul.f32 %v1198, %v1201
    %1205 = vrot.lane.b32.xlu0 %v1199, 96
    %v1206 = vpop.permute.xlu0 %1205
    %v1208 = vmul.f32 %v1198, %v1206
    %1210 = vrot.lane.b32.xlu0 %v1208, 16
    %v1211 = vpop.permute.xlu0 %1210
    %v1213 = vadd.f32 %v1203, %v1211
    %v1214 = vtanh.pop %v1213
    %1216 = vrot.lane.b32.xlu0 %v1214, 32
    %v1217 = vpop.permute.xlu0 %1216
    %v1219 = vmul.f32 %v1198, %v1217
    %1221 = vrot.lane.b32.xlu0 %v1219, 80
    %v1222 = vpop.permute.xlu0 %1221
    %v1223 = vsel %vm155, %v1222, 0
    %1225 = vmatpush.msra.mxu0 0.0
    %1226 = vmatpush.msra.mxu0 0.0
    %1227 = vmatpush.msra.mxu0 0.0
    %1228 = vmatpush.msra.mxu0 0.0
    %1229 = vmatpush.msra.mxu0 0.0
    %1230 = vmatpush.msra.mxu0 0.0
    %1231 = vmatpush.msra.mxu0 0.0
    %1232 = vmatpush.msra.mxu0 0.0
    %1233 = vmatpush.msra.mxu0 0.0
    %1234 = vmatpush.msra.mxu0 0.0
    %1235 = vmatpush.msra.mxu0 0.0
    %1236 = vmatpush.msra.mxu0 0.0
    %1237 = vmatpush.msra.mxu0 0.0
    %1238 = vmatpush.msra.mxu0 0.0
    %1239 = vmatpush.msra.mxu0 %v885
    %1240 = vmatpush.msra.mxu0 %v884
    %1241 = vmatmul.f32.gmra.mxu0 %v1223
    %v1242 = vpop.f32.mrf.mxu0
    %v1243 = vadd.f32 0.0, %v1242
    %1244 = vdwg.mxu0
    %v1246 = vrot.slane %v1243, 6
    %v1248 = vadd.f32 %v882, %v1246
    %v1249 = vxor.u32 %v1248, 2147483648
    %v1250 = vmul.f32 %v1249, 1.442695
    %v1251 = vpow.pop %v1250
    %v1252 = vadd.f32 %v1251, 1.0
    %v1253 = vrcp.pop %v1252
    %v1254 = vmul.f32 %v1252, %v1253
    %v1255 = vsub.f32 1.0, %v1254
    %v1256 = vmul.f32 %v1253, %v1255
    %v1257 = vadd.f32 %v1253, %v1256
    %vm1258 = vweird.f32 %v1252
    %vm1259 = vweird.f32 %v1253
    %vm1260 = vmor %vm1258, %vm1259
    %v1261 = vsel %vm1260, %v1253, %v1257
    %v1262 = vand.u32 2147483647, %v1252
    %vm1263 = vcmp.eq.f32.partialorder %v1262, 8.507059e+37
    %v1264 = vand.u32 %v1252, 2147483648
    %v1265 = vor.u32 1.1754944e-38, %v1264
    %v1266 = vsel %vm1263, %v1265, %v1261
    %v1267 = vmul.f32 1.0, %v1266
    %v1268 = vtanh.pop %v1248
    %v1270 = vrot.slane %v1213, 6
    %v1272 = vmul.f32 %v1267, %v1270
    %1274 = vrot.lane.b32.xlu0 %v1268, 96
    %v1275 = vpop.permute.xlu0 %1274
    %v1277 = vmul.f32 %v1267, %v1275
    %1279 = vrot.lane.b32.xlu0 %v1277, 16
    %v1280 = vpop.permute.xlu0 %1279
    %v1282 = vadd.f32 %v1272, %v1280
    %v1283 = vtanh.pop %v1282
    %1285 = vrot.lane.b32.xlu0 %v1283, 32
    %v1286 = vpop.permute.xlu0 %1285
    %v1288 = vmul.f32 %v1267, %v1286
    %v1289 = vld [vmem:[%s2] sm:$0x3]
    %v1290 = vld [vmem:[%s14] sm:$0xff]
    %v1291 = vld [vmem:[%s14 + $0x8] sm:$0xff]
    %v1292 = vld [vmem:[%s15] sm:$0xff]
    %v1293 = vld [vmem:[%s15 + $0x8] sm:$0xff]
    %v1294 = vld [vmem:[%s15 + $0x10] sm:$0xff]
    %v1295 = vld [vmem:[%s15 + $0x18] sm:$0xff]
    %v1296 = vld [vmem:[%s16] sm:$0xff]
    %v1297 = vld [vmem:[%s16 + $0x8] sm:$0xff]
    %v1298 = vld [vmem:[%s16 + $0x10] sm:$0xff]
    %v1299 = vld [vmem:[%s16 + $0x18] sm:$0xff]
    %v1300 = vld [vmem:[%s17] sm:$0x3]
    %v1301 = vld [vmem:[%s18] sm:$0xff]
    %v1302 = vld [vmem:[%s18 + $0x8] sm:$0xff]
    %v1303 = vld [vmem:[%s18 + $0x10] sm:$0xff]
    %v1304 = vld [vmem:[%s18 + $0x18] sm:$0xff]
    %v1305 = vld [vmem:[%s18 + $0x20] sm:$0xff]
    %v1306 = vld [vmem:[%s18 + $0x28] sm:$0xff]
    %v1307 = vld [vmem:[%s18 + $0x30] sm:$0xff]
    %v1308 = vld [vmem:[%s18 + $0x38] sm:$0xff]
    %v1309 = vld [vmem:[%s18 + $0x40] sm:$0xff]
    %v1310 = vld [vmem:[%s18 + $0x48] sm:$0xff]
    %v1311 = vld [vmem:[%s18 + $0x50] sm:$0xff]
    %v1312 = vld [vmem:[%s18 + $0x58] sm:$0xff]
    %v1313 = vld [vmem:[%s18 + $0x60] sm:$0xff]
    %v1314 = vld [vmem:[%s18 + $0x68] sm:$0xff]
    %v1315 = vld [vmem:[%s18 + $0x70] sm:$0xff]
    %v1316 = vld [vmem:[%s18 + $0x78] sm:$0xff]
    %v1317 = vld [vmem:[%s18 + $0x80] sm:$0xff]
    %v1318 = vld [vmem:[%s18 + $0x88] sm:$0xff]
    %v1319 = vld [vmem:[%s18 + $0x90] sm:$0xff]
    %v1320 = vld [vmem:[%s18 + $0x98] sm:$0xff]
    %v1321 = vld [vmem:[%s18 + $0xa0] sm:$0xff]
    %v1322 = vld [vmem:[%s18 + $0xa8] sm:$0xff]
    %v1323 = vld [vmem:[%s18 + $0xb0] sm:$0xff]
    %v1324 = vld [vmem:[%s18 + $0xb8] sm:$0xff]
    %v1325 = vld [vmem:[%s18 + $0xc0] sm:$0xff]
    %v1326 = vld [vmem:[%s18 + $0xc8] sm:$0xff]
    %v1327 = vld [vmem:[%s18 + $0xd0] sm:$0xff]
    %v1328 = vld [vmem:[%s18 + $0xd8] sm:$0xff]
    %v1329 = vld [vmem:[%s18 + $0xe0] sm:$0xff]
    %v1330 = vld [vmem:[%s18 + $0xe8] sm:$0xff]
    %v1331 = vld [vmem:[%s18 + $0xf0] sm:$0xff]
    %v1332 = vld [vmem:[%s18 + $0xf8] sm:$0xff]
    %v1333 = vld [vmem:[%s19] sm:$0x1]
    %1334 = vmatpush.msra.mxu0 0.0
    %1335 = vmatpush.msra.mxu0 0.0
    %1336 = vmatpush.msra.mxu0 0.0
    %1337 = vmatpush.msra.mxu0 0.0
    %1338 = vmatpush.msra.mxu0 0.0
    %1339 = vmatpush.msra.mxu0 0.0
    %1340 = vmatpush.msra.mxu0 0.0
    %1341 = vmatpush.msra.mxu0 0.0
    %1342 = vmatpush.msra.mxu0 0.0
    %1343 = vmatpush.msra.mxu0 0.0
    %1344 = vmatpush.msra.mxu0 0.0
    %1345 = vmatpush.msra.mxu0 0.0
    %1346 = vmatpush.msra.mxu0 0.0
    %1347 = vmatpush.msra.mxu0 0.0
    %1348 = vmatpush.msra.mxu0 %v1294
    %1349 = vmatpush.msra.mxu0 %v1292
    %1350 = vmatmul.f32.gmra.mxu0 %v708
    %v1351 = vpop.f32.mrf.mxu0
    %v1352 = vadd.f32 0.0, %v1351
    %1353 = vdwg.mxu0
    %1354 = vmatpush.msra.mxu0 0.0
    %1355 = vmatpush.msra.mxu0 0.0
    %1356 = vmatpush.msra.mxu0 0.0
    %1357 = vmatpush.msra.mxu0 0.0
    %1358 = vmatpush.msra.mxu0 0.0
    %1359 = vmatpush.msra.mxu0 0.0
    %1360 = vmatpush.msra.mxu0 0.0
    %1361 = vmatpush.msra.mxu0 0.0
    %1362 = vmatpush.msra.mxu0 0.0
    %1363 = vmatpush.msra.mxu0 0.0
    %1364 = vmatpush.msra.mxu0 0.0
    %1365 = vmatpush.msra.mxu0 0.0
    %1366 = vmatpush.msra.mxu0 0.0
    %1367 = vmatpush.msra.mxu0 0.0
    %1368 = vmatpush.msra.mxu0 %v1295
    %1369 = vmatpush.msra.mxu0 %v1293
    %1370 = vmatmul.f32.gmra.mxu0 %v708
    %v1371 = vpop.f32.mrf.mxu0
    %v1372 = vadd.f32 0.0, %v1371
    %1373 = vdwg.mxu0
    %vm1374 = vcmask 64512
    %v1376 = vsel %vm1374, %v1289, 0
    %1378 = vmatpush.msra.mxu0 0.0
    %1379 = vmatpush.msra.mxu0 0.0
    %1380 = vmatpush.msra.mxu0 0.0
    %1381 = vmatpush.msra.mxu0 0.0
    %1382 = vmatpush.msra.mxu0 0.0
    %1383 = vmatpush.msra.mxu0 0.0
    %1384 = vmatpush.msra.mxu0 0.0
    %1385 = vmatpush.msra.mxu0 0.0
    %1386 = vmatpush.msra.mxu0 0.0
    %1387 = vmatpush.msra.mxu0 0.0
    %1388 = vmatpush.msra.mxu0 0.0
    %1389 = vmatpush.msra.mxu0 0.0
    %1390 = vmatpush.msra.mxu0 0.0
    %1391 = vmatpush.msra.mxu0 0.0
    %1392 = vmatpush.msra.mxu0 0.0
    %1393 = vmatpush.msra.mxu0 %v1290
    %1394 = vmatmul.f32.gmra.mxu0 %v1376
    %v1395 = vpop.f32.mrf.mxu0
    %v1396 = vadd.f32 %v1352, %v1395
    %1397 = vdwg.mxu0
    %1398 = vmatpush.msra.mxu0 0.0
    %1399 = vmatpush.msra.mxu0 0.0
    %1400 = vmatpush.msra.mxu0 0.0
    %1401 = vmatpush.msra.mxu0 0.0
    %1402 = vmatpush.msra.mxu0 0.0
    %1403 = vmatpush.msra.mxu0 0.0
    %1404 = vmatpush.msra.mxu0 0.0
    %1405 = vmatpush.msra.mxu0 0.0
    %1406 = vmatpush.msra.mxu0 0.0
    %1407 = vmatpush.msra.mxu0 0.0
    %1408 = vmatpush.msra.mxu0 0.0
    %1409 = vmatpush.msra.mxu0 0.0
    %1410 = vmatpush.msra.mxu0 0.0
    %1411 = vmatpush.msra.mxu0 0.0
    %1412 = vmatpush.msra.mxu0 0.0
    %1413 = vmatpush.msra.mxu0 %v1291
    %1414 = vmatmul.f32.gmra.mxu0 %v1376
    %v1415 = vpop.f32.mrf.mxu0
    %v1416 = vadd.f32 %v1372, %v1415
    %1417 = vdwg.mxu0
    %v1419 = vperm.slane %v1300, 0
    %v1420 = vperm.slane %v1300, 1
    %v1423 = vadd.f32 %v1396, %v1419
    %v1424 = vadd.f32 %v1416, %v1420
    %v1426 = vrot.slane %v1288, 2
    %1427 = vrot.lane.b32.xlu0 %v1426, 80
    %v1428 = vpop.permute.xlu0 %1427
    %v1429 = vsel %vm155, %v1428, 0
    %1431 = vmatpush.msra.mxu0 0.0
    %1432 = vmatpush.msra.mxu0 0.0
    %1433 = vmatpush.msra.mxu0 0.0
    %1434 = vmatpush.msra.mxu0 0.0
    %1435 = vmatpush.msra.mxu0 0.0
    %1436 = vmatpush.msra.mxu0 0.0
    %1437 = vmatpush.msra.mxu0 0.0
    %1438 = vmatpush.msra.mxu0 0.0
    %1439 = vmatpush.msra.mxu0 0.0
    %1440 = vmatpush.msra.mxu0 0.0
    %1441 = vmatpush.msra.mxu0 0.0
    %1442 = vmatpush.msra.mxu0 0.0
    %1443 = vmatpush.msra.mxu0 0.0
    %1444 = vmatpush.msra.mxu0 0.0
    %1445 = vmatpush.msra.mxu0 %v1298
    %1446 = vmatpush.msra.mxu0 %v1296
    %1447 = vmatmul.f32.gmra.mxu0 %v1429
    %v1448 = vpop.f32.mrf.mxu0
    %v1449 = vadd.f32 0.0, %v1448
    %1450 = vdwg.mxu0
    %1451 = vmatpush.msra.mxu0 0.0
    %1452 = vmatpush.msra.mxu0 0.0
    %1453 = vmatpush.msra.mxu0 0.0
    %1454 = vmatpush.msra.mxu0 0.0
    %1455 = vmatpush.msra.mxu0 0.0
    %1456 = vmatpush.msra.mxu0 0.0
    %1457 = vmatpush.msra.mxu0 0.0
    %1458 = vmatpush.msra.mxu0 0.0
    %1459 = vmatpush.msra.mxu0 0.0
    %1460 = vmatpush.msra.mxu0 0.0
    %1461 = vmatpush.msra.mxu0 0.0
    %1462 = vmatpush.msra.mxu0 0.0
    %1463 = vmatpush.msra.mxu0 0.0
    %1464 = vmatpush.msra.mxu0 0.0
    %1465 = vmatpush.msra.mxu0 %v1299
    %1466 = vmatpush.msra.mxu0 %v1297
    %1467 = vmatmul.f32.gmra.mxu0 %v1429
    %v1468 = vpop.f32.mrf.mxu0
    %v1469 = vadd.f32 0.0, %v1468
    %1470 = vdwg.mxu0
    %v1471 = vadd.f32 %v1423, %v1449
    %v1472 = vadd.f32 %v1424, %v1469
    %v1473 = vmax.f32 %v1471, 0.0
    %v1474 = vmax.f32 %v1472, 0.0
    %v1476 = vperm.slane %v1333, 0
    %1478 = vmatpush.msra.mxu0 %v1316
    %1479 = vmatpush.msra.mxu0 %v1315
    %1480 = vmatpush.msra.mxu0 %v1314
    %1481 = vmatpush.msra.mxu0 %v1313
    %1482 = vmatpush.msra.mxu0 %v1312
    %1483 = vmatpush.msra.mxu0 %v1311
    %1484 = vmatpush.msra.mxu0 %v1310
    %1485 = vmatpush.msra.mxu0 %v1309
    %1486 = vmatpush.msra.mxu0 %v1308
    %1487 = vmatpush.msra.mxu0 %v1307
    %1488 = vmatpush.msra.mxu0 %v1306
    %1489 = vmatpush.msra.mxu0 %v1305
    %1490 = vmatpush.msra.mxu0 %v1304
    %1491 = vmatpush.msra.mxu0 %v1303
    %1492 = vmatpush.msra.mxu0 %v1302
    %1493 = vmatpush.msra.mxu0 %v1301
    %1494 = vmatmul.f32.gmra.mxu0 %v1473
    %v1495 = vpop.f32.mrf.mxu0
    %v1496 = vadd.f32 %v1476, %v1495
    %1497 = vdwg.mxu0
    %1498 = vmatpush.msra.mxu0 %v1332
    %1499 = vmatpush.msra.mxu0 %v1331
    %1500 = vmatpush.msra.mxu0 %v1330
    %1501 = vmatpush.msra.mxu0 %v1329
    %1502 = vmatpush.msra.mxu0 %v1328
    %1503 = vmatpush.msra.mxu0 %v1327
    %1504 = vmatpush.msra.mxu0 %v1326
    %1505 = vmatpush.msra.mxu0 %v1325
    %1506 = vmatpush.msra.mxu0 %v1324
    %1507 = vmatpush.msra.mxu0 %v1323
    %1508 = vmatpush.msra.mxu0 %v1322
    %1509 = vmatpush.msra.mxu0 %v1321
    %1510 = vmatpush.msra.mxu0 %v1320
    %1511 = vmatpush.msra.mxu0 %v1319
    %1512 = vmatpush.msra.mxu0 %v1318
    %1513 = vmatpush.msra.mxu0 %v1317
    %1514 = vmatmul.f32.gmra.mxu0 %v1474
    %v1515 = vpop.f32.mrf.mxu0
    %v1516 = vadd.f32 %v1496, %v1515
    %1517 = vdwg.mxu0
    %vm1518 = vcmask 33792
    %v1519 = vsel %vm1518, %v1516, -inf
    %1520 = vmax.xlane.f32.xlu0 %v1519
    %v1521 = vpop.xlane.xlu0 %1520
    %v1522 = vsub.f32 %v1516, %v1521
    %v1523 = vmul.f32 %v1522, 1.442695
    %v1524 = vpow.pop %v1523
    %v1525 = vsel %vm1518, %v1524, 0.0
    %1526 = vadd.xlane.f32.xlu0 %v1525
    %v1527 = vpop.xlane.xlu0 %1526
    %v1528 = vrcp.pop %v1527
    %v1529 = vmul.f32 %v1527, %v1528
    %v1530 = vsub.f32 1.0, %v1529
    %v1531 = vmul.f32 %v1528, %v1530
    %v1532 = vadd.f32 %v1528, %v1531
    %vm1533 = vweird.f32 %v1527
    %vm1534 = vweird.f32 %v1528
    %vm1535 = vmor %vm1533, %vm1534
    %v1536 = vsel %vm1535, %v1528, %v1532
    %v1537 = vand.u32 2147483647, %v1527
    %vm1538 = vcmp.eq.f32.partialorder %v1537, 8.507059e+37
    %v1539 = vand.u32 %v1527, 2147483648
    %v1540 = vor.u32 1.1754944e-38, %v1539
    %v1541 = vsel %vm1538, %v1540, %v1536
    %v1542 = vmul.f32 %v1524, %v1541
    %1543 = vst.msk [vmem:[#allocation2] sm:$0x3] %vm1518, %v1542
    // Predicated region
    $region82: #{tpu_custom_call.1} parent=1 // pred_check
      _
    $region83: #{tpu_custom_call.1} parent=1 // pred_check_branch
      %1545 = sbr.rel (0) target = $region85
    $region84: #{tpu_custom_call.1} parent=1 // pred_region
      %1547 = vsyncadd [#allocation3], 0
      %s1549 = sshll.u32 [#allocation2], 4
      %s1550 = int_to_ptr.vmem [resolvable:$true] %s1549
      %s1551 = sshll.u32 %s20, 4
      %s1552 = int_to_ptr.hbm [resolvable:$true] %s1551
      %1554 = dma.vmem_to_hbm [thread:$0]  %s1550, 32, %s1552, [#allocation3]
    $region85: #{tpu_custom_call.1} parent=1 // pred_fallthru
      _
    // Predicated region
    $region86: #{tpu_custom_call.1} parent=1 // pred_check
      _
    $region87: #{tpu_custom_call.1} parent=1 // pred_check_branch
      %1556 = sbr.rel (0) target = $region89
    $region88: #{tpu_custom_call.1} parent=1 // pred_region
      %1558 = dma.done [#allocation3], 32
    $region89: #{tpu_custom_call.1} parent=1 // pred_fallthru
      _
    %1559 = vsyncpa [#allocation3], 1

</llo_original>
